<compile_context>
chip_gen: v7x
topology: tpu7x:2x2x1
jax: 0.10.0
libtpu: 0.0.40
codegen_flags: <defaults>
</compile_context>

<pallas_src>
import jax
import jax.numpy as jnp
from jax.experimental import pallas as pl
from jax.experimental.pallas import tpu as pltpu

NUM_CLASSES = 100
CIN, COUT = 3, 32
H = W = 32                     # implied by fc = Linear(32*16*16, 100)
KH = KW = 3
PH, PW = H // 2, W // 2
K_PATCH = KH * KW * CIN        # 27
K_BLOCK = 4 * K_PATCH          # 108 = 4 pool taps x 27
N_BLOCK = 4 * COUT             # 128 = 4 pool taps x 32 (lane-dense dot output)
FC_IN = COUT * PH * PW         # 8192
FC_SPLIT = 2                   # parallel K-halves for the FC kernel
FC_KH = FC_IN // FC_SPLIT      # 4096 per step


# ---------------- Pallas kernels (hot path) ----------------

def conv_relu_pool_kernel(p_ref, w_ref, b_ref, o_ref):
    # p_ref: [tp, 108] -- the 4 conv patches of each 2x2 pool window, lane-concatenated.
    # w_ref: [108, 128] block-diagonal conv weight (tap q rows -> columns 32q..32q+31).
    # b_ref: [1, 32], o_ref: [tp, 32] pooled output.
    y = jnp.dot(p_ref[...], w_ref[...], preferred_element_type=jnp.float32)  # [tp,128]
    # 2x2 max-pool = max over the 4 column groups: two XLU rolls + VPU maxes.
    m = jnp.maximum(y, pltpu.roll(y, 64, 1))
    m = jnp.maximum(m, pltpu.roll(m, 32, 1))       # every 32-lane group now holds the max
    # max(relu(x_q + b)) == relu(max(x_q) + b): add bias + ReLU once after the max.
    o_ref[...] = jnp.maximum(m[:, :COUT] + b_ref[...], 0.0)
    # TODO(synk): lane-dense [tp/4, 128] output store (identical memory order) would
    # avoid masked 32-lane vst's, at the cost of an in-kernel sublane->lane relayout.


def fc_partial_kernel(x_ref, w_ref, o_ref):
    # x_ref: [B, 4096] half of the flattened activations, w_ref: [4096, 100],
    # o_ref: [1, B, 100] partial product for this K-half (summed outside).
    o_ref[0] = jnp.dot(x_ref[...], w_ref[...], preferred_element_type=jnp.float32)


# ---------------- one-time parameter preparation ----------------

def prepare_params(conv_w, conv_b, fc_w, fc_b):
    # conv OIHW -> (kh, kw, cin, cout) -> [27, 32], then block-diagonal [108, 128]:
    # tap q's 27 rows feed output columns 32q..32q+31.
    w_mat = jnp.transpose(conv_w, (2, 3, 1, 0)).reshape(K_PATCH, COUT)
    wbd = jnp.zeros((K_BLOCK, N_BLOCK), dtype=conv_w.dtype)
    for q in range(4):
        wbd = wbd.at[q * K_PATCH:(q + 1) * K_PATCH, q * COUT:(q + 1) * COUT].set(w_mat)
    conv_b_row = conv_b.reshape(1, COUT)

    # torch flatten order is f = co*(PH*PW) + s (NCHW); our activations come out as
    # j = s*COUT + co, so permute fc_w rows once.  No 100->128 column pad: the FC is
    # weight-DMA bound and 100 == full last dim is a legal block.
    fc_w2 = jnp.transpose(fc_w.reshape(NUM_CLASSES, COUT, PH * PW), (2, 1, 0))
    fc_w2 = fc_w2.reshape(FC_IN, NUM_CLASSES)
    return wbd, conv_b_row, fc_w2, fc_b


def _pool_tile(m_pool):
    # Largest multiple-of-256 divisor of m_pool that is <= 2048, preferring a tile
    # that yields >= 4 grid steps (pipelining + v7x megacore sharding), then >= 2.
    assert m_pool % 256 == 0
    divs = [t for t in range(256, min(2048, m_pool) + 1, 256) if m_pool % t == 0]
    for min_steps in (4, 2, 1):
        ok = [t for t in divs if m_pool // t >= min_steps]
        if ok:
            return max(ok)
    return 256


# ---------------- forward pass ----------------

@jax.jit
def simple_cnn_forward(x_nchw, wbd, conv_b_row, fc_w2, fc_b):
    B = x_nchw.shape[0]
    m_pool = B * PH * PW

    # glue: im2col patches, pool-window taps concatenated along lanes -> [M_pool, 108]
    x_nhwc = jnp.transpose(x_nchw, (0, 2, 3, 1))                    # [B,32,32,3]
    x_pad = jnp.pad(x_nhwc, ((0, 0), (1, 1), (1, 1), (0, 0)))       # [B,34,34,3]
    taps = [x_pad[:, dh:dh + H, dw:dw + W, :]
            for dh in range(KH) for dw in range(KW)]                # 9 x [B,32,32,3]
    patches = jnp.stack(taps, axis=3).reshape(B, H, W, K_PATCH)     # [B,32,32,27]
    patches = patches.reshape(B, PH, 2, PW, 2, K_PATCH)
    patches = jnp.transpose(patches, (0, 1, 3, 2, 4, 5)).reshape(m_pool, K_BLOCK)
    # TODO(synk): build the 108-wide patches inside the kernel from NHWC halo row
    # strips (memory_space=pl.ANY + in-VMEM tap assembly) to kill the ~9x im2col HBM
    # expansion -- the largest remaining bandwidth cost at big batch, esp. on v7x.

    tp = _pool_tile(m_pool)
    assert m_pool % tp == 0
    pooled = pl.pallas_call(
        conv_relu_pool_kernel,
        out_shape=jax.ShapeDtypeStruct((m_pool, COUT), jnp.float32),
        grid=(m_pool // tp,),
        in_specs=[pl.BlockSpec((tp, K_BLOCK), lambda i: (i, 0)),
                  pl.BlockSpec((K_BLOCK, N_BLOCK), lambda i: (0, 0)),
                  pl.BlockSpec((1, COUT), lambda i: (0, 0))],
        out_specs=pl.BlockSpec((tp, COUT), lambda i: (i, 0)),
        compiler_params=pltpu.CompilerParams(dimension_semantics=("parallel",)),
    )(patches, wbd, conv_b_row)

    # flatten is a pure reshape (no transpose): feature j = s*COUT + co,
    # which prepare_params already baked into fc_w2's row order.
    flat = pooled.reshape(B, FC_IN)

    assert FC_IN % FC_SPLIT == 0
    partials = pl.pallas_call(
        fc_partial_kernel,
        out_shape=jax.ShapeDtypeStruct((FC_SPLIT, B, NUM_CLASSES), jnp.float32),
        grid=(FC_SPLIT,),
        in_specs=[pl.BlockSpec((B, FC_KH), lambda p: (0, p)),
                  pl.BlockSpec((FC_KH, NUM_CLASSES), lambda p: (p, 0))],
        out_specs=pl.BlockSpec((1, B, NUM_CLASSES), lambda p: (p, 0, 0)),
        compiler_params=pltpu.CompilerParams(dimension_semantics=("parallel",)),
    )(flat, fc_w2)

    # trivial epilogue on a [B,100] array: sum the two K-half partials, add bias.
    return partials.sum(axis=0) + fc_b


# ---------------- pure-JAX reference for verification ----------------

def reference_forward(x, conv_w, conv_b, fc_w, fc_b):
    y = jax.lax.conv_general_dilated(
        x, conv_w, window_strides=(1, 1), padding=((1, 1), (1, 1)),
        dimension_numbers=("NCHW", "OIHW", "NCHW"),
        precision=jax.lax.Precision.HIGHEST)
    y = y + conv_b.reshape(1, -1, 1, 1)
    y = jnp.maximum(y, 0.0)
    y = jax.lax.reduce_window(y, -jnp.inf, jax.lax.max,
                              (1, 1, 2, 2), (1, 1, 2, 2), "VALID")
    y = y.reshape(y.shape[0], -1)
    return jnp.dot(y, fc_w.T, precision=jax.lax.Precision.HIGHEST) + fc_b


if __name__ == "__main__":
    key = jax.random.PRNGKey(0)
    kx, kw1, kb1, kw2, kb2 = jax.random.split(key, 5)

    B = 2
    x = jax.random.normal(kx, (B, CIN, H, W), dtype=jnp.float32)

    # deterministic synthetic parameters (shapes from the module's __init__)
    conv_w = jax.random.normal(kw1, (COUT, CIN, KH, KW), dtype=jnp.float32) * 0.1
    conv_b = jax.random.normal(kb1, (COUT,), dtype=jnp.float32) * 0.1
    fc_w = jax.random.normal(kw2, (NUM_CLASSES, FC_IN), dtype=jnp.float32) * 0.02
    fc_b = jax.random.normal(kb2, (NUM_CLASSES,), dtype=jnp.float32) * 0.02

    params = prepare_params(conv_w, conv_b, fc_w, fc_b)
    out = jax.block_until_ready(simple_cnn_forward(x, *params))
    assert out.shape == (B, NUM_CLASSES) and out.dtype == jnp.float32

    ref = reference_forward(x, conv_w, conv_b, fc_w, fc_b)
    max_err = float(jnp.max(jnp.abs(out - ref)))
    assert max_err < 5e-2, f"mismatch vs reference, max abs err = {max_err}"

    print("KERNEL_OK")
</pallas_src>

<mosaic_0001>
module attributes {stable_mosaic.version = 11 : i64} {
  func.func @conv_relu_pool_kernel(%arg0: i32, %arg1: memref<256x108xf32, #tpu.memory_space<vmem>>, %arg2: memref<108x128xf32, #tpu.memory_space<vmem>>, %arg3: memref<1x32xf32, #tpu.memory_space<vmem>>, %arg4: memref<256x32xf32, #tpu.memory_space<vmem>>) attributes {dimension_semantics = [#tpu.dimension_semantics<parallel>], iteration_bounds = array<i64: 2>, scalar_prefetch = 0 : i64, scratch_operands = 0 : i64, tpu.core_type = #tpu.core_type<tc>, window_params = [{transform_indices = @transform_0, window_bounds = array<i64: 256, 108>}, {pipeline_mode = #tpu.pipeline_mode<synchronous>, transform_indices = @transform_1, window_bounds = array<i64: 108, 128>}, {pipeline_mode = #tpu.pipeline_mode<synchronous>, transform_indices = @transform_2, window_bounds = array<i64: 1, 32>}, {transform_indices = @transform_3, window_bounds = array<i64: 256, 32>}]} {
    %c0 = arith.constant 0 : index
    %c0_0 = arith.constant 0 : index
    %0 = vector.load %arg1[%c0, %c0_0] : memref<256x108xf32, #tpu.memory_space<vmem>>, vector<256x108xf32>
    %c0_1 = arith.constant 0 : index
    %c0_2 = arith.constant 0 : index
    %1 = vector.load %arg2[%c0_1, %c0_2] : memref<108x128xf32, #tpu.memory_space<vmem>>, vector<108x128xf32>
    %cst = arith.constant dense<0.000000e+00> : vector<256x128xf32>
    %2 = tpu.matmul %0, %1, %cst {dimension_numbers = #tpu.dot_dimension_numbers<[1], [0], [0], [1], [0, 0, 1, 1], [], []>} : vector<256x108xf32>, vector<108x128xf32>, vector<256x128xf32> -> vector<256x128xf32>
    %c64_i32 = arith.constant 64 : i32
    %3 = tpu.dynamic_rotate %2 by %c64_i32 dim 1 : vector<256x128xf32>, i32 -> vector<256x128xf32>
    %4 = arith.maximumf %2, %3 : vector<256x128xf32>
    %c32_i32 = arith.constant 32 : i32
    %5 = tpu.dynamic_rotate %4 by %c32_i32 dim 1 : vector<256x128xf32>, i32 -> vector<256x128xf32>
    %6 = arith.maximumf %4, %5 : vector<256x128xf32>
    %7 = vector.extract_strided_slice %6 {offsets = [0, 0], sizes = [256, 32], strides = [1, 1]} : vector<256x128xf32> to vector<256x32xf32>
    %c0_3 = arith.constant 0 : index
    %c0_4 = arith.constant 0 : index
    %8 = vector.load %arg3[%c0_3, %c0_4] : memref<1x32xf32, #tpu.memory_space<vmem>>, vector<1x32xf32>
    %9 = vector.broadcast %8 : vector<1x32xf32> to vector<256x32xf32>
    %10 = arith.addf %7, %9 : vector<256x32xf32>
    %cst_5 = arith.constant 0.000000e+00 : f32
    %11 = vector.broadcast %cst_5 : f32 to vector<256x32xf32>
    %12 = arith.maximumf %10, %11 : vector<256x32xf32>
    %c0_6 = arith.constant 0 : index
    %c0_7 = arith.constant 0 : index
    %13 = vector.load %arg4[%c0_6, %c0_7] : memref<256x32xf32, #tpu.memory_space<vmem>>, vector<256x32xf32>
    tpu.vector_store %arg4[%c0_6, %c0_7], %12 {strides = array<i32>} : memref<256x32xf32, #tpu.memory_space<vmem>>, vector<256x32xf32>,
    return
  }
  func.func @transform_0(%arg0: i32) -> (i32, i32) {
    %c0_i32 = arith.constant 0 : i32
    %c0_i32_0 = arith.constant 0 : i32
    return %arg0, %c0_i32 : i32, i32
  }
  func.func @transform_1(%arg0: i32) -> (i32, i32) {
    %c0_i32 = arith.constant 0 : i32
    %c0_i32_0 = arith.constant 0 : i32
    %c0_i32_1 = arith.constant 0 : i32
    return %c0_i32, %c0_i32_0 : i32, i32
  }
  func.func @transform_2(%arg0: i32) -> (i32, i32) {
    %c0_i32 = arith.constant 0 : i32
    %c0_i32_0 = arith.constant 0 : i32
    %c0_i32_1 = arith.constant 0 : i32
    return %c0_i32, %c0_i32_0 : i32, i32
  }
  func.func @transform_3(%arg0: i32) -> (i32, i32) {
    %c0_i32 = arith.constant 0 : i32
    %c0_i32_0 = arith.constant 0 : i32
    return %arg0, %c0_i32 : i32, i32
  }
}

module attributes {stable_mosaic.version = 11 : i64} {
  func.func @fc_partial_kernel(%arg0: i32, %arg1: memref<2x4096xf32, #tpu.memory_space<vmem>>, %arg2: memref<4096x100xf32, #tpu.memory_space<vmem>>, %arg3: memref<1x2x100xf32, #tpu.memory_space<vmem>>) attributes {dimension_semantics = [#tpu.dimension_semantics<parallel>], iteration_bounds = array<i64: 2>, scalar_prefetch = 0 : i64, scratch_operands = 0 : i64, tpu.core_type = #tpu.core_type<tc>, window_params = [{transform_indices = @transform_0, window_bounds = array<i64: 2, 4096>}, {transform_indices = @transform_1, window_bounds = array<i64: 4096, 100>}, {transform_indices = @transform_2, window_bounds = array<i64: 1, 2, 100>}]} {
    %c0 = arith.constant 0 : index
    %c0_0 = arith.constant 0 : index
    %0 = vector.load %arg1[%c0, %c0_0] : memref<2x4096xf32, #tpu.memory_space<vmem>>, vector<2x4096xf32>
    %c0_1 = arith.constant 0 : index
    %c0_2 = arith.constant 0 : index
    %1 = vector.load %arg2[%c0_1, %c0_2] : memref<4096x100xf32, #tpu.memory_space<vmem>>, vector<4096x100xf32>
    %cst = arith.constant dense<0.000000e+00> : vector<2x100xf32>
    %2 = tpu.matmul %0, %1, %cst {dimension_numbers = #tpu.dot_dimension_numbers<[1], [0], [0], [1], [0, 0, 1, 1], [], []>} : vector<2x4096xf32>, vector<4096x100xf32>, vector<2x100xf32> -> vector<2x100xf32>
    %c0_3 = arith.constant 0 : index
    %c0_4 = arith.constant 0 : index
    %c0_5 = arith.constant 0 : index
    %3 = vector.load %arg3[%c0_3, %c0_4, %c0_5] : memref<1x2x100xf32, #tpu.memory_space<vmem>>, vector<1x2x100xf32>
    %4 = vector.shape_cast %3 : vector<1x2x100xf32> to vector<2x100xf32>
    %5 = vector.shape_cast %2 : vector<2x100xf32> to vector<1x2x100xf32>
    tpu.vector_store %arg3[%c0_3, %c0_4, %c0_5], %5 {strides = array<i32>} : memref<1x2x100xf32, #tpu.memory_space<vmem>>, vector<1x2x100xf32>,
    return
  }
  func.func @transform_0(%arg0: i32) -> (i32, i32) {
    %c0_i32 = arith.constant 0 : i32
    %c0_i32_0 = arith.constant 0 : i32
    return %c0_i32, %arg0 : i32, i32
  }
  func.func @transform_1(%arg0: i32) -> (i32, i32) {
    %c0_i32 = arith.constant 0 : i32
    %c0_i32_0 = arith.constant 0 : i32
    return %arg0, %c0_i32 : i32, i32
  }
  func.func @transform_2(%arg0: i32) -> (i32, i32, i32) {
    %c0_i32 = arith.constant 0 : i32
    %c0_i32_0 = arith.constant 0 : i32
    %c0_i32_1 = arith.constant 0 : i32
    return %arg0, %c0_i32, %c0_i32_0 : i32, i32, i32
  }
}

</mosaic_0001>

<llo_original>
// kernel: simple_cnn_forward.2
$region0: #{simple_cnn_forward.2}
  #allocation0 [shape = 'u32[]', space=smem, size = 0x4, offset = 0x4, fixed_abs, tag = 'smem constant byte address 0x4 - core index']
  #allocation1 [shape = 'u32[144,128]{1,0:T(1,128)}', space=vmem, size = 0x12000, scoped, tag = 'internal scratch']
  %s0 = inlined_call_operand.vmem [shape: f32[512,108], index: 0, kind: input, shape index: {}]
  %s1 = inlined_call_operand.vmem [shape: f32[108,128], index: 1, kind: input, shape index: {}]
  %s2 = inlined_call_operand.vmem [shape: f32[1,32], index: 2, kind: input, shape index: {}]
  %s3 = inlined_call_operand.vmem [shape: f32[512,32], index: 3, kind: output, shape index: {}]
  %s4 = sld [smem:[#allocation0]]
  $region45: #{simple_cnn_forward.2} parent=0
    _
  %s6 = ssub.s32 1, %s4
  %s7 = scalar_select 0, %s6, %s4
  loop: start=0, step=1, limit=4
  $region2: #{simple_cnn_forward.2} parent=0 // loop_pre_header
    _
  $region3: #{simple_cnn_forward.2} parent=0 // loop_header
    %s9 = sphi 0, %s13
    %p10 = scmp.ge.s32.totalorder %s9, 4
    %s19 = sphi 0, %s21
    %s22 = sphi 0, %s19
    %s23 = sphi 0, %s22
    %s39 = sphi 0, %s23
    %s43 = sphi 0, %s43
    %s45 = sphi 0, %s43
    %s46 = sphi 0, %s45
    %s60 = sphi 0, %s46
    %s64 = sphi 0, %s64
    %s66 = sphi 0, %s64
    %s67 = sphi 0, %s66
    %s81 = sphi 0, %s67
    %s87 = sphi 0, %s89
    %s90 = sphi 0, %s87
    %s91 = sphi 0, %s90
    %s107 = sphi 0, %s91
  $region4: #{simple_cnn_forward.2} parent=0 // loop_header_branch
    %12 = sbr.rel (%p10) target = $region8
  $region5: #{simple_cnn_forward.2} parent=0 // loop_body
    %s14 = ssub.s32 %s9, 1
    %s15 = ssub.s32 %s9, 2
    %s16 = sadd.s32 %s9, 1
    %s17 = ssub.s32 %s9, %s16
    %p18 = scmp.eq.s32.totalorder %s17, 0
    %s20 = sadd.s32 %s19, 1
    %s21 = scalar_select %p18, %s19, %s20
    %p24 = pneg %p18
    %p25 = scmp.eq.s32.totalorder %s9, 1
    %p26 = por %p24, %p25
    %p27 = scmp.ne.s32.totalorder %s19, %s22
    %p28 = scmp.eq.s32.totalorder %s9, 0
    %p29 = por %p27, %p28
    %p30 = scmp.ne.s32.totalorder %s19, %s22
    %p31 = scmp.eq.s32.totalorder %s14, 1
    %p32 = por %p30, %p31
    %p33 = scmp.ne.s32.totalorder %s22, %s23
    %p34 = scmp.eq.s32.totalorder %s14, 0
    %p35 = por %p33, %p34
    %p36 = scmp.ne.s32.totalorder %s22, %s23
    %p37 = scmp.eq.s32.totalorder %s15, 1
    %p38 = por %p36, %p37
    %p40 = scmp.ne.s32.totalorder %s23, %s39
    %p41 = scmp.eq.s32.totalorder %s15, 0
    %p42 = por %p40, %p41
    %s44 = sadd.s32 %s43, 1
    %p47 = scmp.eq.s32.totalorder %s9, 1
    %p48 = scmp.ne.s32.totalorder %s43, %s45
    %p49 = scmp.eq.s32.totalorder %s9, 0
    %p50 = por %p48, %p49
    %p51 = scmp.ne.s32.totalorder %s43, %s45
    %p52 = scmp.eq.s32.totalorder %s14, 1
    %p53 = por %p51, %p52
    %p54 = scmp.ne.s32.totalorder %s45, %s46
    %p55 = scmp.eq.s32.totalorder %s14, 0
    %p56 = por %p54, %p55
    %p57 = scmp.ne.s32.totalorder %s45, %s46
    %p58 = scmp.eq.s32.totalorder %s15, 1
    %p59 = por %p57, %p58
    %p61 = scmp.ne.s32.totalorder %s46, %s60
    %p62 = scmp.eq.s32.totalorder %s15, 0
    %p63 = por %p61, %p62
    %s65 = sadd.s32 %s64, 1
    %p68 = scmp.eq.s32.totalorder %s9, 1
    %p69 = scmp.ne.s32.totalorder %s64, %s66
    %p70 = scmp.eq.s32.totalorder %s9, 0
    %p71 = por %p69, %p70
    %p72 = scmp.ne.s32.totalorder %s64, %s66
    %p73 = scmp.eq.s32.totalorder %s14, 1
    %p74 = por %p72, %p73
    %p75 = scmp.ne.s32.totalorder %s66, %s67
    %p76 = scmp.eq.s32.totalorder %s14, 0
    %p77 = por %p75, %p76
    %p78 = scmp.ne.s32.totalorder %s66, %s67
    %p79 = scmp.eq.s32.totalorder %s15, 1
    %p80 = por %p78, %p79
    %p82 = scmp.ne.s32.totalorder %s67, %s81
    %p83 = scmp.eq.s32.totalorder %s15, 0
    %p84 = por %p82, %p83
    %s85 = ssub.s32 %s9, %s16
    %p86 = scmp.eq.s32.totalorder %s85, 0
    %s88 = sadd.s32 %s87, 1
    %s89 = scalar_select %p86, %s87, %s88
    %p92 = pneg %p86
    %p93 = scmp.eq.s32.totalorder %s9, 1
    %p94 = por %p92, %p93
    %p95 = scmp.ne.s32.totalorder %s87, %s90
    %p96 = scmp.eq.s32.totalorder %s9, 0
    %p97 = por %p95, %p96
    %p98 = scmp.ne.s32.totalorder %s87, %s90
    %p99 = scmp.eq.s32.totalorder %s14, 1
    %p100 = por %p98, %p99
    %p101 = scmp.ne.s32.totalorder %s90, %s91
    %p102 = scmp.eq.s32.totalorder %s14, 0
    %p103 = por %p101, %p102
    %p104 = scmp.ne.s32.totalorder %s90, %s91
    %p105 = scmp.eq.s32.totalorder %s15, 1
    %p106 = por %p104, %p105
    %p108 = scmp.ne.s32.totalorder %s91, %s107
    %p109 = scmp.eq.s32.totalorder %s15, 0
    %p110 = por %p108, %p109
    %p111 = scmp.le.s32.totalorder 1, %s9
    %p112 = scmp.lt.s32.totalorder %s9, 3
    %p113 = pnand %p111, %p112
    %p114 = pneg %p113
    // Predicated region
    $region9: #{simple_cnn_forward.2} parent=5 // pred_check
      _
    $region10: #{simple_cnn_forward.2} parent=5 // pred_check_branch
      %116 = sbr.rel (%p113) target = $region12
    $region11: #{simple_cnn_forward.2} parent=5 // pred_region
      %s117 = ssub.s32 %s9, 1
      // Predicated region
      $region13: #{simple_cnn_forward.2} parent=11 // pred_check
        %p118 = pneg %p56
      $region14: #{simple_cnn_forward.2} parent=11 // pred_check_branch
        %120 = sbr.rel (%p118) target = $region16
      $region15: #{simple_cnn_forward.2} parent=11 // pred_region
        _
      $region16: #{simple_cnn_forward.2} parent=11 // pred_fallthru
        _
      // Predicated region
      $region17: #{simple_cnn_forward.2} parent=11 // pred_check
        %p121 = pneg %p77
      $region18: #{simple_cnn_forward.2} parent=11 // pred_check_branch
        %123 = sbr.rel (%p121) target = $region20
      $region19: #{simple_cnn_forward.2} parent=11 // pred_region
        _
      $region20: #{simple_cnn_forward.2} parent=11 // pred_fallthru
        _
    $region12: #{simple_cnn_forward.2} parent=5 // pred_fallthru
      _
    %p124 = scmp.lt.s32.totalorder %s9, 2
    // Predicated region
    $region21: #{simple_cnn_forward.2} parent=5 // pred_check
      %p125 = pneg %p124
    $region22: #{simple_cnn_forward.2} parent=5 // pred_check_branch
      %127 = sbr.rel (%p125) target = $region24
    $region23: #{simple_cnn_forward.2} parent=5 // pred_region
      // Predicated region
      $region25: #{simple_cnn_forward.2} parent=23 // pred_check
        %p128 = pneg %p29
      $region26: #{simple_cnn_forward.2} parent=23 // pred_check_branch
        %130 = sbr.rel (%p128) target = $region28
      $region27: #{simple_cnn_forward.2} parent=23 // pred_region
        %s131 = smul.u32 32, %s9
        %p132 = scmp.lt.s32.totalorder %s131, 63
        %s133 = scalar_select %p132, %s131, 63
        %s134 = smul.addr %s133, 8
        %s135 = scalar_lea.vmem %s0, %s134
        %s136 = smul.u32 32, %s9
      $region28: #{simple_cnn_forward.2} parent=23 // pred_fallthru
        _
    $region24: #{simple_cnn_forward.2} parent=5 // pred_fallthru
      _
    %p137 = scmp.le.s32.totalorder 1, %s9
    %p138 = scmp.lt.s32.totalorder %s9, 3
    %p139 = pnand %p137, %p138
    %p140 = pneg %p139
    // Predicated region
    $region29: #{simple_cnn_forward.2} parent=5 // pred_check
      _
    $region30: #{simple_cnn_forward.2} parent=5 // pred_check_branch
      %142 = sbr.rel (%p139) target = $region32
    $region31: #{simple_cnn_forward.2} parent=5 // pred_region
      %s143 = ssub.s32 %s9, 1
      %s144 = smul.u32 32, %s14
      %p145 = scmp.lt.s32.totalorder %s144, 63
      %s146 = scalar_select %p145, %s144, 63
      %s147 = smul.addr %s146, 8
      %s148 = scalar_lea.vmem %s0, %s147
      %p149 = pneg %p35
      %p150 = pneg %p32
      %p151 = pneg %p56
      %p152 = pneg %p53
      %p153 = pneg %p77
      %p154 = pneg %p74
      %p155 = pneg %p103
      %p156 = pneg %p100
      %s157 = smul.u32 32, %s14
      %p158 = scmp.lt.s32.totalorder %s157, 63
      %s159 = scalar_select %p158, %s157, 63
      %s160 = smul.addr %s159, 8
      %s161 = scalar_lea.vmem %s3, %s160
      %s162 = smul.u32 32, %s14
      %p163 = scmp.lt.s32.totalorder %s162, 63
      %s164 = scalar_select %p163, %s162, 63
      %s165 = smul.addr %s164, 8
      %s166 = scalar_lea.vmem %s0, %s165
      %s167 = smul.u32 32, %s14
      %s168 = smul.u32 32, %s14
      %p169 = scmp.lt.s32.totalorder %s168, 63
      %s170 = scalar_select %p169, %s168, 63
      %s171 = smul.addr %s170, 8
      %s172 = scalar_lea.vmem %s3, %s171
      %s173 = smul.u32 32, %s14
      %v174 = vld [vmem:[%s166] sm:$0xff]
      %v175 = vld [vmem:[%s166 + $0x8] sm:$0xff]
      %v176 = vld [vmem:[%s166 + $0x10] sm:$0xff]
      %v177 = vld [vmem:[%s166 + $0x18] sm:$0xff]
      %v178 = vld [vmem:[%s166 + $0x20] sm:$0xff]
      %v179 = vld [vmem:[%s166 + $0x28] sm:$0xff]
      %v180 = vld [vmem:[%s166 + $0x30] sm:$0xff]
      %v181 = vld [vmem:[%s166 + $0x38] sm:$0xff]
      %v182 = vld [vmem:[%s166 + $0x40] sm:$0xff]
      %v183 = vld [vmem:[%s166 + $0x48] sm:$0xff]
      %v184 = vld [vmem:[%s166 + $0x50] sm:$0xff]
      %v185 = vld [vmem:[%s166 + $0x58] sm:$0xff]
      %v186 = vld [vmem:[%s166 + $0x60] sm:$0xff]
      %v187 = vld [vmem:[%s166 + $0x68] sm:$0xff]
      %v188 = vld [vmem:[%s166 + $0x70] sm:$0xff]
      %v189 = vld [vmem:[%s166 + $0x78] sm:$0xff]
      %v190 = vld [vmem:[%s166 + $0x80] sm:$0xff]
      %v191 = vld [vmem:[%s166 + $0x88] sm:$0xff]
      %v192 = vld [vmem:[%s166 + $0x90] sm:$0xff]
      %v193 = vld [vmem:[%s166 + $0x98] sm:$0xff]
      %v194 = vld [vmem:[%s166 + $0xa0] sm:$0xff]
      %v195 = vld [vmem:[%s166 + $0xa8] sm:$0xff]
      %v196 = vld [vmem:[%s166 + $0xb0] sm:$0xff]
      %v197 = vld [vmem:[%s166 + $0xb8] sm:$0xff]
      %v198 = vld [vmem:[%s166 + $0xc0] sm:$0xff]
      %v199 = vld [vmem:[%s166 + $0xc8] sm:$0xff]
      %v200 = vld [vmem:[%s166 + $0xd0] sm:$0xff]
      %v201 = vld [vmem:[%s166 + $0xd8] sm:$0xff]
      %v202 = vld [vmem:[%s166 + $0xe0] sm:$0xff]
      %v203 = vld [vmem:[%s166 + $0xe8] sm:$0xff]
      %v204 = vld [vmem:[%s166 + $0xf0] sm:$0xff]
      %v205 = vld [vmem:[%s166 + $0xf8] sm:$0xff]
      %v206 = vld [vmem:[%s1] sm:$0xff]
      %v207 = vld [vmem:[%s1 + $0x8] sm:$0xff]
      %v208 = vld [vmem:[%s1 + $0x10] sm:$0xff]
      %v209 = vld [vmem:[%s1 + $0x18] sm:$0xff]
      %v210 = vld [vmem:[%s1 + $0x20] sm:$0xff]
      %v211 = vld [vmem:[%s1 + $0x28] sm:$0xff]
      %v212 = vld [vmem:[%s1 + $0x30] sm:$0xff]
      %v213 = vld [vmem:[%s1 + $0x38] sm:$0xff]
      %v214 = vld [vmem:[%s1 + $0x40] sm:$0xff]
      %v215 = vld [vmem:[%s1 + $0x48] sm:$0xff]
      %v216 = vld [vmem:[%s1 + $0x50] sm:$0xff]
      %v217 = vld [vmem:[%s1 + $0x58] sm:$0xff]
      %v218 = vld [vmem:[%s1 + $0x60] sm:$0xff]
      %v219 = vld [vmem:[%s1 + $0x68] sm:$0xf]
      %vm220 = vcmask 883712
      %v222 = vsel %vm220, %v174, 0
      %v225 = vsel %vm220, %v175, 0
      %v228 = vsel %vm220, %v176, 0
      %v231 = vsel %vm220, %v177, 0
      %v234 = vsel %vm220, %v178, 0
      %v237 = vsel %vm220, %v179, 0
      %v240 = vsel %vm220, %v180, 0
      %v243 = vsel %vm220, %v181, 0
      %v246 = vsel %vm220, %v182, 0
      %v249 = vsel %vm220, %v183, 0
      %v252 = vsel %vm220, %v184, 0
      %v255 = vsel %vm220, %v185, 0
      %v258 = vsel %vm220, %v186, 0
      %v261 = vsel %vm220, %v187, 0
      %v264 = vsel %vm220, %v188, 0
      %v267 = vsel %vm220, %v189, 0
      %v270 = vsel %vm220, %v190, 0
      %v273 = vsel %vm220, %v191, 0
      %v276 = vsel %vm220, %v192, 0
      %v279 = vsel %vm220, %v193, 0
      %v282 = vsel %vm220, %v194, 0
      %v285 = vsel %vm220, %v195, 0
      %v288 = vsel %vm220, %v196, 0
      %v291 = vsel %vm220, %v197, 0
      %v294 = vsel %vm220, %v198, 0
      %v297 = vsel %vm220, %v199, 0
      %v300 = vsel %vm220, %v200, 0
      %v303 = vsel %vm220, %v201, 0
      %v306 = vsel %vm220, %v202, 0
      %v309 = vsel %vm220, %v203, 0
      %v312 = vsel %vm220, %v204, 0
      %v315 = vsel %vm220, %v205, 0
      %vm317 = vcmask 1043456
      %v319 = vsel %vm317, %v219, 0
      %321 = vmatprep.subr.mxu0 0.0
      %322 = vmatpush1.msra.mxu0 %v206
      %323 = vmatprep.subr.mxu0 0.0
      %324 = vmatpush1.msra.mxu0 %v207
      %325 = vmatprep.subr.mxu0 0.0
      %326 = vmatpush1.msra.mxu0 %v208
      %327 = vmatprep.subr.mxu0 0.0
      %328 = vmatpush1.msra.mxu0 %v209
      %329 = vmatprep.subr.mxu0 0.0
      %330 = vmatpush1.msra.mxu0 %v210
      %331 = vmatprep.subr.mxu0 0.0
      %332 = vmatpush1.msra.mxu0 %v211
      %333 = vmatprep.subr.mxu0 0.0
      %334 = vmatpush1.msra.mxu0 %v212
      %335 = vmatprep.subr.mxu0 0.0
      %336 = vmatpush1.msra.mxu0 %v213
      %337 = vmatprep.subr.mxu0 0.0
      %338 = vmatpush1.msra.mxu0 %v214
      %339 = vmatprep.subr.mxu0 0.0
      %340 = vmatpush1.msra.mxu0 %v215
      %341 = vmatprep.subr.mxu0 0.0
      %342 = vmatpush1.msra.mxu0 %v216
      %343 = vmatprep.subr.mxu0 0.0
      %344 = vmatpush1.msra.mxu0 %v217
      %345 = vmatprep.subr.mxu0 0.0
      %346 = vmatpush1.msra.mxu0 %v218
      %347 = vmatprep.subr.mxu0 0.0
      %348 = vmatpush1.msra.mxu0 %v319
      %349 = vmatprep.subr.mxu0 0.0
      %350 = vmatpush1.msra.mxu0 0.0
      %351 = vmatprep.subr.mxu0 0.0
      %352 = vmatpush1.msra.mxu0 0.0
      %353 = vmatprep.subr.mxu0 0.0
      %354 = vmatpush1.msra.mxu0 0.0
      %355 = vmatprep.subr.mxu0 0.0
      %356 = vmatpush1.msra.mxu0 0.0
      %357 = vmatprep.subr.mxu0 0.0
      %358 = vmatpush1.msra.mxu0 0.0
      %359 = vmatprep.subr.mxu0 0.0
      %360 = vmatpush1.msra.mxu0 0.0
      %361 = vmatprep.subr.mxu0 0.0
      %362 = vmatpush1.msra.mxu0 0.0
      %363 = vmatprep.subr.mxu0 0.0
      %364 = vmatpush1.msra.mxu0 0.0
      %365 = vmatprep.subr.mxu0 0.0
      %366 = vmatpush1.msra.mxu0 0.0
      %367 = vmatprep.subr.mxu0 0.0
      %368 = vmatpush1.msra.mxu0 0.0
      %369 = vmatprep.subr.mxu0 0.0
      %370 = vmatpush1.msra.mxu0 0.0
      %371 = vmatprep.subr.mxu0 0.0
      %372 = vmatpush1.msra.mxu0 0.0
      %373 = vmatprep.subr.mxu0 0.0
      %374 = vmatpush1.msra.mxu0 0.0
      %375 = vmatprep.subr.mxu0 0.0
      %376 = vmatpush1.msra.mxu0 0.0
      %377 = vmatprep.subr.mxu0 0.0
      %378 = vmatpush1.msra.mxu0 0.0
      %379 = vmatprep.subr.mxu0 0.0
      %380 = vmatpush1.msra.mxu0 0.0
      %381 = vmatprep.subr.mxu0 0.0
      %382 = vmatpush1.msra.mxu0 0.0
      %383 = vmatprep.subr.mxu0 0.0
      %384 = vmatpush1.msra.mxu0 0.0
      %385 = vmatprep.mubr.f32.mxu0 0.0
      %386 = vmatmul.mubr.f32.gmra.mrb[0].mxu0 %v222
      %v387 = vpop.f32.mrb[0].mxu0
      %v388 = vadd.f32 0.0, %v387
      %v389 = vpop.f32.mrb[0].mxu0
      %390 = vmatprep.mubr.f32.mxu0 0.0
      %391 = vmatmul.mubr.f32.gmra.mrb[0].mxu0 %v225
      %v392 = vpop.f32.mrb[0].mxu0
      %v393 = vadd.f32 0.0, %v392
      %v394 = vpop.f32.mrb[0].mxu0
      %395 = vmatprep.mubr.f32.mxu0 0.0
      %396 = vmatmul.mubr.f32.gmra.mrb[0].mxu0 %v228
      %v397 = vpop.f32.mrb[0].mxu0
      %v398 = vadd.f32 0.0, %v397
      %v399 = vpop.f32.mrb[0].mxu0
      %400 = vmatprep.mubr.f32.mxu0 0.0
      %401 = vmatmul.mubr.f32.gmra.mrb[0].mxu0 %v231
      %v402 = vpop.f32.mrb[0].mxu0
      %v403 = vadd.f32 0.0, %v402
      %v404 = vpop.f32.mrb[0].mxu0
      %405 = vmatprep.mubr.f32.mxu0 0.0
      %406 = vmatmul.mubr.f32.gmra.mrb[0].mxu0 %v234
      %v407 = vpop.f32.mrb[0].mxu0
      %v408 = vadd.f32 0.0, %v407
      %v409 = vpop.f32.mrb[0].mxu0
      %410 = vmatprep.mubr.f32.mxu0 0.0
      %411 = vmatmul.mubr.f32.gmra.mrb[0].mxu0 %v237
      %v412 = vpop.f32.mrb[0].mxu0
      %v413 = vadd.f32 0.0, %v412
      %v414 = vpop.f32.mrb[0].mxu0
      %415 = vmatprep.mubr.f32.mxu0 0.0
      %416 = vmatmul.mubr.f32.gmra.mrb[0].mxu0 %v240
      %v417 = vpop.f32.mrb[0].mxu0
      %v418 = vadd.f32 0.0, %v417
      %v419 = vpop.f32.mrb[0].mxu0
      %420 = vmatprep.mubr.f32.mxu0 0.0
      %421 = vmatmul.mubr.f32.gmra.mrb[0].mxu0 %v243
      %v422 = vpop.f32.mrb[0].mxu0
      %v423 = vadd.f32 0.0, %v422
      %v424 = vpop.f32.mrb[0].mxu0
      %425 = vmatprep.mubr.f32.mxu0 0.0
      %426 = vmatmul.mubr.f32.gmra.mrb[0].mxu0 %v246
      %v427 = vpop.f32.mrb[0].mxu0
      %v428 = vadd.f32 0.0, %v427
      %v429 = vpop.f32.mrb[0].mxu0
      %430 = vmatprep.mubr.f32.mxu0 0.0
      %431 = vmatmul.mubr.f32.gmra.mrb[0].mxu0 %v249
      %v432 = vpop.f32.mrb[0].mxu0
      %v433 = vadd.f32 0.0, %v432
      %v434 = vpop.f32.mrb[0].mxu0
      %435 = vmatprep.mubr.f32.mxu0 0.0
      %436 = vmatmul.mubr.f32.gmra.mrb[0].mxu0 %v252
      %v437 = vpop.f32.mrb[0].mxu0
      %v438 = vadd.f32 0.0, %v437
      %v439 = vpop.f32.mrb[0].mxu0
      %440 = vmatprep.mubr.f32.mxu0 0.0
      %441 = vmatmul.mubr.f32.gmra.mrb[0].mxu0 %v255
      %v442 = vpop.f32.mrb[0].mxu0
      %v443 = vadd.f32 0.0, %v442
      %v444 = vpop.f32.mrb[0].mxu0
      %445 = vmatprep.mubr.f32.mxu0 0.0
      %446 = vmatmul.mubr.f32.gmra.mrb[0].mxu0 %v258
      %v447 = vpop.f32.mrb[0].mxu0
      %v448 = vadd.f32 0.0, %v447
      %v449 = vpop.f32.mrb[0].mxu0
      %450 = vmatprep.mubr.f32.mxu0 0.0
      %451 = vmatmul.mubr.f32.gmra.mrb[0].mxu0 %v261
      %v452 = vpop.f32.mrb[0].mxu0
      %v453 = vadd.f32 0.0, %v452
      %v454 = vpop.f32.mrb[0].mxu0
      %455 = vmatprep.mubr.f32.mxu0 0.0
      %456 = vmatmul.mubr.f32.gmra.mrb[0].mxu0 %v264
      %v457 = vpop.f32.mrb[0].mxu0
      %v458 = vadd.f32 0.0, %v457
      %v459 = vpop.f32.mrb[0].mxu0
      %460 = vmatprep.mubr.f32.mxu0 0.0
      %461 = vmatmul.mubr.f32.gmra.mrb[0].mxu0 %v267
      %v462 = vpop.f32.mrb[0].mxu0
      %v463 = vadd.f32 0.0, %v462
      %v464 = vpop.f32.mrb[0].mxu0
      %465 = vmatprep.mubr.f32.mxu0 0.0
      %466 = vmatmul.mubr.f32.gmra.mrb[0].mxu0 %v270
      %v467 = vpop.f32.mrb[0].mxu0
      %v468 = vadd.f32 0.0, %v467
      %v469 = vpop.f32.mrb[0].mxu0
      %470 = vmatprep.mubr.f32.mxu0 0.0
      %471 = vmatmul.mubr.f32.gmra.mrb[0].mxu0 %v273
      %v472 = vpop.f32.mrb[0].mxu0
      %v473 = vadd.f32 0.0, %v472
      %v474 = vpop.f32.mrb[0].mxu0
      %475 = vmatprep.mubr.f32.mxu0 0.0
      %476 = vmatmul.mubr.f32.gmra.mrb[0].mxu0 %v276
      %v477 = vpop.f32.mrb[0].mxu0
      %v478 = vadd.f32 0.0, %v477
      %v479 = vpop.f32.mrb[0].mxu0
      %480 = vmatprep.mubr.f32.mxu0 0.0
      %481 = vmatmul.mubr.f32.gmra.mrb[0].mxu0 %v279
      %v482 = vpop.f32.mrb[0].mxu0
      %v483 = vadd.f32 0.0, %v482
      %v484 = vpop.f32.mrb[0].mxu0
      %485 = vmatprep.mubr.f32.mxu0 0.0
      %486 = vmatmul.mubr.f32.gmra.mrb[0].mxu0 %v282
      %v487 = vpop.f32.mrb[0].mxu0
      %v488 = vadd.f32 0.0, %v487
      %v489 = vpop.f32.mrb[0].mxu0
      %490 = vmatprep.mubr.f32.mxu0 0.0
      %491 = vmatmul.mubr.f32.gmra.mrb[0].mxu0 %v285
      %v492 = vpop.f32.mrb[0].mxu0
      %v493 = vadd.f32 0.0, %v492
      %v494 = vpop.f32.mrb[0].mxu0
      %495 = vmatprep.mubr.f32.mxu0 0.0
      %496 = vmatmul.mubr.f32.gmra.mrb[0].mxu0 %v288
      %v497 = vpop.f32.mrb[0].mxu0
      %v498 = vadd.f32 0.0, %v497
      %v499 = vpop.f32.mrb[0].mxu0
      %500 = vmatprep.mubr.f32.mxu0 0.0
      %501 = vmatmul.mubr.f32.gmra.mrb[0].mxu0 %v291
      %v502 = vpop.f32.mrb[0].mxu0
      %v503 = vadd.f32 0.0, %v502
      %v504 = vpop.f32.mrb[0].mxu0
      %505 = vmatprep.mubr.f32.mxu0 0.0
      %506 = vmatmul.mubr.f32.gmra.mrb[0].mxu0 %v294
      %v507 = vpop.f32.mrb[0].mxu0
      %v508 = vadd.f32 0.0, %v507
      %v509 = vpop.f32.mrb[0].mxu0
      %510 = vmatprep.mubr.f32.mxu0 0.0
      %511 = vmatmul.mubr.f32.gmra.mrb[0].mxu0 %v297
      %v512 = vpop.f32.mrb[0].mxu0
      %v513 = vadd.f32 0.0, %v512
      %v514 = vpop.f32.mrb[0].mxu0
      %515 = vmatprep.mubr.f32.mxu0 0.0
      %516 = vmatmul.mubr.f32.gmra.mrb[0].mxu0 %v300
      %v517 = vpop.f32.mrb[0].mxu0
      %v518 = vadd.f32 0.0, %v517
      %v519 = vpop.f32.mrb[0].mxu0
      %520 = vmatprep.mubr.f32.mxu0 0.0
      %521 = vmatmul.mubr.f32.gmra.mrb[0].mxu0 %v303
      %v522 = vpop.f32.mrb[0].mxu0
      %v523 = vadd.f32 0.0, %v522
      %v524 = vpop.f32.mrb[0].mxu0
      %525 = vmatprep.mubr.f32.mxu0 0.0
      %526 = vmatmul.mubr.f32.gmra.mrb[0].mxu0 %v306
      %v527 = vpop.f32.mrb[0].mxu0
      %v528 = vadd.f32 0.0, %v527
      %v529 = vpop.f32.mrb[0].mxu0
      %530 = vmatprep.mubr.f32.mxu0 0.0
      %531 = vmatmul.mubr.f32.gmra.mrb[0].mxu0 %v309
      %v532 = vpop.f32.mrb[0].mxu0
      %v533 = vadd.f32 0.0, %v532
      %v534 = vpop.f32.mrb[0].mxu0
      %535 = vmatprep.mubr.f32.mxu0 0.0
      %536 = vmatmul.mubr.f32.gmra.mrb[0].mxu0 %v312
      %v537 = vpop.f32.mrb[0].mxu0
      %v538 = vadd.f32 0.0, %v537
      %v539 = vpop.f32.mrb[0].mxu0
      %540 = vmatprep.mubr.f32.mxu0 0.0
      %541 = vmatmul.mubr.f32.gmra.mrb[0].mxu0 %v315
      %v542 = vpop.f32.mrb[0].mxu0
      %v543 = vadd.f32 0.0, %v542
      %v544 = vpop.f32.mrb[0].mxu0
      %545 = vdwg.mxu0
      %546 = vrot.lane.b32.xlu0 %v388, 64
      %v547 = vpop.permute.xlu0 %546
      %548 = vrot.lane.b32.xlu0 %v393, 64
      %v549 = vpop.permute.xlu0 %548
      %550 = vrot.lane.b32.xlu0 %v398, 64
      %v551 = vpop.permute.xlu0 %550
      %552 = vrot.lane.b32.xlu0 %v403, 64
      %v553 = vpop.permute.xlu0 %552
      %554 = vrot.lane.b32.xlu0 %v408, 64
      %v555 = vpop.permute.xlu0 %554
      %556 = vrot.lane.b32.xlu0 %v413, 64
      %v557 = vpop.permute.xlu0 %556
      %558 = vrot.lane.b32.xlu0 %v418, 64
      %v559 = vpop.permute.xlu0 %558
      %560 = vrot.lane.b32.xlu0 %v423, 64
      %v561 = vpop.permute.xlu0 %560
      %562 = vrot.lane.b32.xlu0 %v428, 64
      %v563 = vpop.permute.xlu0 %562
      %564 = vrot.lane.b32.xlu0 %v433, 64
      %v565 = vpop.permute.xlu0 %564
      %566 = vrot.lane.b32.xlu0 %v438, 64
      %v567 = vpop.permute.xlu0 %566
      %568 = vrot.lane.b32.xlu0 %v443, 64
      %v569 = vpop.permute.xlu0 %568
      %570 = vrot.lane.b32.xlu0 %v448, 64
      %v571 = vpop.permute.xlu0 %570
      %572 = vrot.lane.b32.xlu0 %v453, 64
      %v573 = vpop.permute.xlu0 %572
      %574 = vrot.lane.b32.xlu0 %v458, 64
      %v575 = vpop.permute.xlu0 %574
      %576 = vrot.lane.b32.xlu0 %v463, 64
      %v577 = vpop.permute.xlu0 %576
      %578 = vrot.lane.b32.xlu0 %v468, 64
      %v579 = vpop.permute.xlu0 %578
      %580 = vrot.lane.b32.xlu0 %v473, 64
      %v581 = vpop.permute.xlu0 %580
      %582 = vrot.lane.b32.xlu0 %v478, 64
      %v583 = vpop.permute.xlu0 %582
      %584 = vrot.lane.b32.xlu0 %v483, 64
      %v585 = vpop.permute.xlu0 %584
      %586 = vrot.lane.b32.xlu0 %v488, 64
      %v587 = vpop.permute.xlu0 %586
      %588 = vrot.lane.b32.xlu0 %v493, 64
      %v589 = vpop.permute.xlu0 %588
      %590 = vrot.lane.b32.xlu0 %v498, 64
      %v591 = vpop.permute.xlu0 %590
      %592 = vrot.lane.b32.xlu0 %v503, 64
      %v593 = vpop.permute.xlu0 %592
      %594 = vrot.lane.b32.xlu0 %v508, 64
      %v595 = vpop.permute.xlu0 %594
      %596 = vrot.lane.b32.xlu0 %v513, 64
      %v597 = vpop.permute.xlu0 %596
      %598 = vrot.lane.b32.xlu0 %v518, 64
      %v599 = vpop.permute.xlu0 %598
      %600 = vrot.lane.b32.xlu0 %v523, 64
      %v601 = vpop.permute.xlu0 %600
      %602 = vrot.lane.b32.xlu0 %v528, 64
      %v603 = vpop.permute.xlu0 %602
      %604 = vrot.lane.b32.xlu0 %v533, 64
      %v605 = vpop.permute.xlu0 %604
      %606 = vrot.lane.b32.xlu0 %v538, 64
      %v607 = vpop.permute.xlu0 %606
      %608 = vrot.lane.b32.xlu0 %v543, 64
      %v609 = vpop.permute.xlu0 %608
      %v610 = vmax.f32 %v388, %v547
      %v611 = vmax.f32 %v393, %v549
      %v612 = vmax.f32 %v398, %v551
      %v613 = vmax.f32 %v403, %v553
      %v614 = vmax.f32 %v408, %v555
      %v615 = vmax.f32 %v413, %v557
      %v616 = vmax.f32 %v418, %v559
      %v617 = vmax.f32 %v423, %v561
      %v618 = vmax.f32 %v428, %v563
      %v619 = vmax.f32 %v433, %v565
      %v620 = vmax.f32 %v438, %v567
      %v621 = vmax.f32 %v443, %v569
      %v622 = vmax.f32 %v448, %v571
      %v623 = vmax.f32 %v453, %v573
      %v624 = vmax.f32 %v458, %v575
      %v625 = vmax.f32 %v463, %v577
      %v626 = vmax.f32 %v468, %v579
      %v627 = vmax.f32 %v473, %v581
      %v628 = vmax.f32 %v478, %v583
      %v629 = vmax.f32 %v483, %v585
      %v630 = vmax.f32 %v488, %v587
      %v631 = vmax.f32 %v493, %v589
      %v632 = vmax.f32 %v498, %v591
      %v633 = vmax.f32 %v503, %v593
      %v634 = vmax.f32 %v508, %v595
      %v635 = vmax.f32 %v513, %v597
      %v636 = vmax.f32 %v518, %v599
      %v637 = vmax.f32 %v523, %v601
      %v638 = vmax.f32 %v528, %v603
      %v639 = vmax.f32 %v533, %v605
      %v640 = vmax.f32 %v538, %v607
      %v641 = vmax.f32 %v543, %v609
      %642 = vrot.lane.b32.xlu0 %v610, 32
      %v643 = vpop.permute.xlu0 %642
      %644 = vrot.lane.b32.xlu0 %v611, 32
      %v645 = vpop.permute.xlu0 %644
      %646 = vrot.lane.b32.xlu0 %v612, 32
      %v647 = vpop.permute.xlu0 %646
      %648 = vrot.lane.b32.xlu0 %v613, 32
      %v649 = vpop.permute.xlu0 %648
      %650 = vrot.lane.b32.xlu0 %v614, 32
      %v651 = vpop.permute.xlu0 %650
      %652 = vrot.lane.b32.xlu0 %v615, 32
      %v653 = vpop.permute.xlu0 %652
      %654 = vrot.lane.b32.xlu0 %v616, 32
      %v655 = vpop.permute.xlu0 %654
      %656 = vrot.lane.b32.xlu0 %v617, 32
      %v657 = vpop.permute.xlu0 %656
      %658 = vrot.lane.b32.xlu0 %v618, 32
      %v659 = vpop.permute.xlu0 %658
      %660 = vrot.lane.b32.xlu0 %v619, 32
      %v661 = vpop.permute.xlu0 %660
      %662 = vrot.lane.b32.xlu0 %v620, 32
      %v663 = vpop.permute.xlu0 %662
      %664 = vrot.lane.b32.xlu0 %v621, 32
      %v665 = vpop.permute.xlu0 %664
      %666 = vrot.lane.b32.xlu0 %v622, 32
      %v667 = vpop.permute.xlu0 %666
      %668 = vrot.lane.b32.xlu0 %v623, 32
      %v669 = vpop.permute.xlu0 %668
      %670 = vrot.lane.b32.xlu0 %v624, 32
      %v671 = vpop.permute.xlu0 %670
      %672 = vrot.lane.b32.xlu0 %v625, 32
      %v673 = vpop.permute.xlu0 %672
      %674 = vrot.lane.b32.xlu0 %v626, 32
      %v675 = vpop.permute.xlu0 %674
      %676 = vrot.lane.b32.xlu0 %v627, 32
      %v677 = vpop.permute.xlu0 %676
      %678 = vrot.lane.b32.xlu0 %v628, 32
      %v679 = vpop.permute.xlu0 %678
      %680 = vrot.lane.b32.xlu0 %v629, 32
      %v681 = vpop.permute.xlu0 %680
      %682 = vrot.lane.b32.xlu0 %v630, 32
      %v683 = vpop.permute.xlu0 %682
      %684 = vrot.lane.b32.xlu0 %v631, 32
      %v685 = vpop.permute.xlu0 %684
      %686 = vrot.lane.b32.xlu0 %v632, 32
      %v687 = vpop.permute.xlu0 %686
      %688 = vrot.lane.b32.xlu0 %v633, 32
      %v689 = vpop.permute.xlu0 %688
      %690 = vrot.lane.b32.xlu0 %v634, 32
      %v691 = vpop.permute.xlu0 %690
      %692 = vrot.lane.b32.xlu0 %v635, 32
      %v693 = vpop.permute.xlu0 %692
      %694 = vrot.lane.b32.xlu0 %v636, 32
      %v695 = vpop.permute.xlu0 %694
      %696 = vrot.lane.b32.xlu0 %v637, 32
      %v697 = vpop.permute.xlu0 %696
      %698 = vrot.lane.b32.xlu0 %v638, 32
      %v699 = vpop.permute.xlu0 %698
      %700 = vrot.lane.b32.xlu0 %v639, 32
      %v701 = vpop.permute.xlu0 %700
      %702 = vrot.lane.b32.xlu0 %v640, 32
      %v703 = vpop.permute.xlu0 %702
      %704 = vrot.lane.b32.xlu0 %v641, 32
      %v705 = vpop.permute.xlu0 %704
      %v706 = vmax.f32 %v610, %v643
      %v707 = vmax.f32 %v611, %v645
      %v708 = vmax.f32 %v612, %v647
      %v709 = vmax.f32 %v613, %v649
      %v710 = vmax.f32 %v614, %v651
      %v711 = vmax.f32 %v615, %v653
      %v712 = vmax.f32 %v616, %v655
      %v713 = vmax.f32 %v617, %v657
      %v714 = vmax.f32 %v618, %v659
      %v715 = vmax.f32 %v619, %v661
      %v716 = vmax.f32 %v620, %v663
      %v717 = vmax.f32 %v621, %v665
      %v718 = vmax.f32 %v622, %v667
      %v719 = vmax.f32 %v623, %v669
      %v720 = vmax.f32 %v624, %v671
      %v721 = vmax.f32 %v625, %v673
      %v722 = vmax.f32 %v626, %v675
      %v723 = vmax.f32 %v627, %v677
      %v724 = vmax.f32 %v628, %v679
      %v725 = vmax.f32 %v629, %v681
      %v726 = vmax.f32 %v630, %v683
      %v727 = vmax.f32 %v631, %v685
      %v728 = vmax.f32 %v632, %v687
      %v729 = vmax.f32 %v633, %v689
      %v730 = vmax.f32 %v634, %v691
      %v731 = vmax.f32 %v635, %v693
      %v732 = vmax.f32 %v636, %v695
      %v733 = vmax.f32 %v637, %v697
      %v734 = vmax.f32 %v638, %v699
      %v735 = vmax.f32 %v639, %v701
      %v736 = vmax.f32 %v640, %v703
      %v737 = vmax.f32 %v641, %v705
      %v738 = vld [vmem:[%s2] sm:$0x1]
      %v740 = vlaneseq
      %v741 = vshrl.u32 %v740, 7
      %v742 = vsub.s32 0, %v741
      %v743 = vrot.slane %v738, %v742
      %v745 = vadd.f32 %v706, %v743
      %v746 = vadd.f32 %v707, %v743
      %v747 = vadd.f32 %v708, %v743
      %v748 = vadd.f32 %v709, %v743
      %v749 = vadd.f32 %v710, %v743
      %v750 = vadd.f32 %v711, %v743
      %v751 = vadd.f32 %v712, %v743
      %v752 = vadd.f32 %v713, %v743
      %v753 = vadd.f32 %v714, %v743
      %v754 = vadd.f32 %v715, %v743
      %v755 = vadd.f32 %v716, %v743
      %v756 = vadd.f32 %v717, %v743
      %v757 = vadd.f32 %v718, %v743
      %v758 = vadd.f32 %v719, %v743
      %v759 = vadd.f32 %v720, %v743
      %v760 = vadd.f32 %v721, %v743
      %v761 = vadd.f32 %v722, %v743
      %v762 = vadd.f32 %v723, %v743
      %v763 = vadd.f32 %v724, %v743
      %v764 = vadd.f32 %v725, %v743
      %v765 = vadd.f32 %v726, %v743
      %v766 = vadd.f32 %v727, %v743
      %v767 = vadd.f32 %v728, %v743
      %v768 = vadd.f32 %v729, %v743
      %v769 = vadd.f32 %v730, %v743
      %v770 = vadd.f32 %v731, %v743
      %v771 = vadd.f32 %v732, %v743
      %v772 = vadd.f32 %v733, %v743
      %v773 = vadd.f32 %v734, %v743
      %v774 = vadd.f32 %v735, %v743
      %v775 = vadd.f32 %v736, %v743
      %v776 = vadd.f32 %v737, %v743
      %v777 = vmax.f32 %v745, 0.0
      %v778 = vmax.f32 %v746, 0.0
      %v779 = vmax.f32 %v747, 0.0
      %v780 = vmax.f32 %v748, 0.0
      %v781 = vmax.f32 %v749, 0.0
      %v782 = vmax.f32 %v750, 0.0
      %v783 = vmax.f32 %v751, 0.0
      %v784 = vmax.f32 %v752, 0.0
      %v785 = vmax.f32 %v753, 0.0
      %v786 = vmax.f32 %v754, 0.0
      %v787 = vmax.f32 %v755, 0.0
      %v788 = vmax.f32 %v756, 0.0
      %v789 = vmax.f32 %v757, 0.0
      %v790 = vmax.f32 %v758, 0.0
      %v791 = vmax.f32 %v759, 0.0
      %v792 = vmax.f32 %v760, 0.0
      %v793 = vmax.f32 %v761, 0.0
      %v794 = vmax.f32 %v762, 0.0
      %v795 = vmax.f32 %v763, 0.0
      %v796 = vmax.f32 %v764, 0.0
      %v797 = vmax.f32 %v765, 0.0
      %v798 = vmax.f32 %v766, 0.0
      %v799 = vmax.f32 %v767, 0.0
      %v800 = vmax.f32 %v768, 0.0
      %v801 = vmax.f32 %v769, 0.0
      %v802 = vmax.f32 %v770, 0.0
      %v803 = vmax.f32 %v771, 0.0
      %v804 = vmax.f32 %v772, 0.0
      %v805 = vmax.f32 %v773, 0.0
      %v806 = vmax.f32 %v774, 0.0
      %v807 = vmax.f32 %v775, 0.0
      %v808 = vmax.f32 %v776, 0.0
      %vm809 = vcmask 261120
      %810 = vst.msk [vmem:[%s172] sm:$0xff] %vm809, %v777
      %811 = vst.msk [vmem:[%s172 + $0x8] sm:$0xff] %vm809, %v778
      %812 = vst.msk [vmem:[%s172 + $0x10] sm:$0xff] %vm809, %v779
      %813 = vst.msk [vmem:[%s172 + $0x18] sm:$0xff] %vm809, %v780
      %814 = vst.msk [vmem:[%s172 + $0x20] sm:$0xff] %vm809, %v781
      %815 = vst.msk [vmem:[%s172 + $0x28] sm:$0xff] %vm809, %v782
      %816 = vst.msk [vmem:[%s172 + $0x30] sm:$0xff] %vm809, %v783
      %817 = vst.msk [vmem:[%s172 + $0x38] sm:$0xff] %vm809, %v784
      %818 = vst.msk [vmem:[%s172 + $0x40] sm:$0xff] %vm809, %v785
      %819 = vst.msk [vmem:[%s172 + $0x48] sm:$0xff] %vm809, %v786
      %820 = vst.msk [vmem:[%s172 + $0x50] sm:$0xff] %vm809, %v787
      %821 = vst.msk [vmem:[%s172 + $0x58] sm:$0xff] %vm809, %v788
      %822 = vst.msk [vmem:[%s172 + $0x60] sm:$0xff] %vm809, %v789
      %823 = vst.msk [vmem:[%s172 + $0x68] sm:$0xff] %vm809, %v790
      %824 = vst.msk [vmem:[%s172 + $0x70] sm:$0xff] %vm809, %v791
      %825 = vst.msk [vmem:[%s172 + $0x78] sm:$0xff] %vm809, %v792
      %826 = vst.msk [vmem:[%s172 + $0x80] sm:$0xff] %vm809, %v793
      %827 = vst.msk [vmem:[%s172 + $0x88] sm:$0xff] %vm809, %v794
      %828 = vst.msk [vmem:[%s172 + $0x90] sm:$0xff] %vm809, %v795
      %829 = vst.msk [vmem:[%s172 + $0x98] sm:$0xff] %vm809, %v796
      %830 = vst.msk [vmem:[%s172 + $0xa0] sm:$0xff] %vm809, %v797
      %831 = vst.msk [vmem:[%s172 + $0xa8] sm:$0xff] %vm809, %v798
      %832 = vst.msk [vmem:[%s172 + $0xb0] sm:$0xff] %vm809, %v799
      %833 = vst.msk [vmem:[%s172 + $0xb8] sm:$0xff] %vm809, %v800
      %834 = vst.msk [vmem:[%s172 + $0xc0] sm:$0xff] %vm809, %v801
      %835 = vst.msk [vmem:[%s172 + $0xc8] sm:$0xff] %vm809, %v802
      %836 = vst.msk [vmem:[%s172 + $0xd0] sm:$0xff] %vm809, %v803
      %837 = vst.msk [vmem:[%s172 + $0xd8] sm:$0xff] %vm809, %v804
      %838 = vst.msk [vmem:[%s172 + $0xe0] sm:$0xff] %vm809, %v805
      %839 = vst.msk [vmem:[%s172 + $0xe8] sm:$0xff] %vm809, %v806
      %840 = vst.msk [vmem:[%s172 + $0xf0] sm:$0xff] %vm809, %v807
      %841 = vst.msk [vmem:[%s172 + $0xf8] sm:$0xff] %vm809, %v808
      %s842 = smul.u32 32, %s14
      %p843 = scmp.lt.s32.totalorder %s842, 63
      %s844 = scalar_select %p843, %s842, 63
      %s845 = smul.addr %s844, 8
      %s846 = scalar_lea.vmem %s3, %s845
      // Predicated region
      $region33: #{simple_cnn_forward.2} parent=31 // pred_check
        %p847 = pneg %p100
      $region34: #{simple_cnn_forward.2} parent=31 // pred_check_branch
        %849 = sbr.rel (%p847) target = $region36
      $region35: #{simple_cnn_forward.2} parent=31 // pred_region
        %s850 = smul.u32 32, %s14
      $region36: #{simple_cnn_forward.2} parent=31 // pred_fallthru
        _
    $region32: #{simple_cnn_forward.2} parent=5 // pred_fallthru
      _
    %p851 = scmp.le.s32.totalorder 2, %s9
    // Predicated region
    $region37: #{simple_cnn_forward.2} parent=5 // pred_check
      %p852 = pneg %p851
    $region38: #{simple_cnn_forward.2} parent=5 // pred_check_branch
      %854 = sbr.rel (%p852) target = $region40
    $region39: #{simple_cnn_forward.2} parent=5 // pred_region
      %s855 = ssub.s32 %s9, 2
      // Predicated region
      $region41: #{simple_cnn_forward.2} parent=39 // pred_check
        %p856 = pneg %p106
      $region42: #{simple_cnn_forward.2} parent=39 // pred_check_branch
        %858 = sbr.rel (%p856) target = $region44
      $region43: #{simple_cnn_forward.2} parent=39 // pred_region
        %s859 = smul.u32 32, %s15
        %p860 = scmp.lt.s32.totalorder %s859, 63
        %s861 = scalar_select %p860, %s859, 63
        %s862 = smul.addr %s861, 8
        %s863 = scalar_lea.vmem %s3, %s862
      $region44: #{simple_cnn_forward.2} parent=39 // pred_fallthru
        _
    $region40: #{simple_cnn_forward.2} parent=5 // pred_fallthru
      _
  $region6: #{simple_cnn_forward.2} parent=0 // loop_footer
    %s13 = sadd.s32 1, %s9
  $region7: #{simple_cnn_forward.2} parent=0 // loop_footer_branch
    %8 = sbr.rel target = $region3
  $region8: #{simple_cnn_forward.2} parent=0 // loop_exit
    _

// kernel: simple_cnn_forward.3
$region0: #{simple_cnn_forward.3}
  #allocation0 [shape = 'u32[]', space=smem, size = 0x4, offset = 0x4, fixed_abs, tag = 'smem constant byte address 0x4 - core index']
  #allocation1 [shape = 'u32[144,128]{1,0:T(1,128)}', space=vmem, size = 0x12000, scoped, tag = 'internal scratch']
  %s0 = inlined_call_operand.vmem [shape: f32[2,8192], index: 0, kind: input, shape index: {}]
  %s1 = inlined_call_operand.vmem [shape: f32[8192,100], index: 1, kind: input, shape index: {}]
  %s2 = inlined_call_operand.vmem [shape: f32[2,2,100], index: 2, kind: output, shape index: {}]
  %s3 = sld [smem:[#allocation0]]
  $region41: #{simple_cnn_forward.3} parent=0
    _
  %s5 = ssub.s32 1, %s3
  %s6 = scalar_select 0, %s5, %s3
  loop: start=0, step=1, limit=4
  $region2: #{simple_cnn_forward.3} parent=0 // loop_pre_header
    _
  $region3: #{simple_cnn_forward.3} parent=0 // loop_header
    %s8 = sphi 0, %s12
    %p9 = scmp.ge.s32.totalorder %s8, 4
    %s18 = sphi 0, %s20
    %s21 = sphi 0, %s18
    %s22 = sphi 0, %s21
    %s38 = sphi 0, %s22
    %s44 = sphi 0, %s46
    %s47 = sphi 0, %s44
    %s48 = sphi 0, %s47
    %s64 = sphi 0, %s48
    %s70 = sphi 0, %s72
    %s73 = sphi 0, %s70
    %s74 = sphi 0, %s73
    %s90 = sphi 0, %s74
  $region4: #{simple_cnn_forward.3} parent=0 // loop_header_branch
    %11 = sbr.rel (%p9) target = $region8
  $region5: #{simple_cnn_forward.3} parent=0 // loop_body
    %s13 = ssub.s32 %s8, 1
    %s14 = ssub.s32 %s8, 2
    %s15 = sadd.s32 %s8, 1
    %s16 = ssub.s32 %s8, %s15
    %p17 = scmp.eq.s32.totalorder %s16, 0
    %s19 = sadd.s32 %s18, 1
    %s20 = scalar_select %p17, %s18, %s19
    %p23 = pneg %p17
    %p24 = scmp.eq.s32.totalorder %s8, 1
    %p25 = por %p23, %p24
    %p26 = scmp.ne.s32.totalorder %s18, %s21
    %p27 = scmp.eq.s32.totalorder %s8, 0
    %p28 = por %p26, %p27
    %p29 = scmp.ne.s32.totalorder %s18, %s21
    %p30 = scmp.eq.s32.totalorder %s13, 1
    %p31 = por %p29, %p30
    %p32 = scmp.ne.s32.totalorder %s21, %s22
    %p33 = scmp.eq.s32.totalorder %s13, 0
    %p34 = por %p32, %p33
    %p35 = scmp.ne.s32.totalorder %s21, %s22
    %p36 = scmp.eq.s32.totalorder %s14, 1
    %p37 = por %p35, %p36
    %p39 = scmp.ne.s32.totalorder %s22, %s38
    %p40 = scmp.eq.s32.totalorder %s14, 0
    %p41 = por %p39, %p40
    %s42 = ssub.s32 %s8, %s15
    %p43 = scmp.eq.s32.totalorder %s42, 0
    %s45 = sadd.s32 %s44, 1
    %s46 = scalar_select %p43, %s44, %s45
    %p49 = pneg %p43
    %p50 = scmp.eq.s32.totalorder %s8, 1
    %p51 = por %p49, %p50
    %p52 = scmp.ne.s32.totalorder %s44, %s47
    %p53 = scmp.eq.s32.totalorder %s8, 0
    %p54 = por %p52, %p53
    %p55 = scmp.ne.s32.totalorder %s44, %s47
    %p56 = scmp.eq.s32.totalorder %s13, 1
    %p57 = por %p55, %p56
    %p58 = scmp.ne.s32.totalorder %s47, %s48
    %p59 = scmp.eq.s32.totalorder %s13, 0
    %p60 = por %p58, %p59
    %p61 = scmp.ne.s32.totalorder %s47, %s48
    %p62 = scmp.eq.s32.totalorder %s14, 1
    %p63 = por %p61, %p62
    %p65 = scmp.ne.s32.totalorder %s48, %s64
    %p66 = scmp.eq.s32.totalorder %s14, 0
    %p67 = por %p65, %p66
    %s68 = ssub.s32 %s8, %s15
    %p69 = scmp.eq.s32.totalorder %s68, 0
    %s71 = sadd.s32 %s70, 1
    %s72 = scalar_select %p69, %s70, %s71
    %p75 = pneg %p69
    %p76 = scmp.eq.s32.totalorder %s8, 1
    %p77 = por %p75, %p76
    %p78 = scmp.ne.s32.totalorder %s70, %s73
    %p79 = scmp.eq.s32.totalorder %s8, 0
    %p80 = por %p78, %p79
    %p81 = scmp.ne.s32.totalorder %s70, %s73
    %p82 = scmp.eq.s32.totalorder %s13, 1
    %p83 = por %p81, %p82
    %p84 = scmp.ne.s32.totalorder %s73, %s74
    %p85 = scmp.eq.s32.totalorder %s13, 0
    %p86 = por %p84, %p85
    %p87 = scmp.ne.s32.totalorder %s73, %s74
    %p88 = scmp.eq.s32.totalorder %s14, 1
    %p89 = por %p87, %p88
    %p91 = scmp.ne.s32.totalorder %s74, %s90
    %p92 = scmp.eq.s32.totalorder %s14, 0
    %p93 = por %p91, %p92
    %p94 = scmp.le.s32.totalorder 1, %s8
    %p95 = scmp.lt.s32.totalorder %s8, 3
    %p96 = pnand %p94, %p95
    %p97 = pneg %p96
    // Predicated region
    $region9: #{simple_cnn_forward.3} parent=5 // pred_check
      _
    $region10: #{simple_cnn_forward.3} parent=5 // pred_check_branch
      %99 = sbr.rel (%p96) target = $region12
    $region11: #{simple_cnn_forward.3} parent=5 // pred_region
      %s100 = ssub.s32 %s8, 1
    $region12: #{simple_cnn_forward.3} parent=5 // pred_fallthru
      _
    %p101 = scmp.lt.s32.totalorder %s8, 2
    // Predicated region
    $region13: #{simple_cnn_forward.3} parent=5 // pred_check
      %p102 = pneg %p101
    $region14: #{simple_cnn_forward.3} parent=5 // pred_check_branch
      %104 = sbr.rel (%p102) target = $region16
    $region15: #{simple_cnn_forward.3} parent=5 // pred_region
      // Predicated region
      $region17: #{simple_cnn_forward.3} parent=15 // pred_check
        %p105 = pneg %p28
      $region18: #{simple_cnn_forward.3} parent=15 // pred_check_branch
        %107 = sbr.rel (%p105) target = $region20
      $region19: #{simple_cnn_forward.3} parent=15 // pred_region
        %s108 = smul.u32 32, %s8
        %p109 = scmp.lt.s32.totalorder %s108, 63
        %s110 = scalar_select %p109, %s108, 63
        %s111 = smul.addr %s110, 2
        %s112 = scalar_lea.vmem %s0, %s111
        %s113 = smul.u32 32, %s8
      $region20: #{simple_cnn_forward.3} parent=15 // pred_fallthru
        _
      // Predicated region
      $region21: #{simple_cnn_forward.3} parent=15 // pred_check
        %p114 = pneg %p54
      $region22: #{simple_cnn_forward.3} parent=15 // pred_check_branch
        %116 = sbr.rel (%p114) target = $region24
      $region23: #{simple_cnn_forward.3} parent=15 // pred_region
        %s117 = smul.u32 512, %s8
        %p118 = scmp.lt.s32.totalorder %s117, 1023
        %s119 = scalar_select %p118, %s117, 1023
        %s120 = smul.addr %s119, 8
        %s121 = scalar_lea.vmem %s1, %s120
        %s122 = smul.u32 512, %s8
      $region24: #{simple_cnn_forward.3} parent=15 // pred_fallthru
        _
    $region16: #{simple_cnn_forward.3} parent=5 // pred_fallthru
      _
    %p123 = scmp.le.s32.totalorder 1, %s8
    %p124 = scmp.lt.s32.totalorder %s8, 3
    %p125 = pnand %p123, %p124
    %p126 = pneg %p125
    // Predicated region
    $region25: #{simple_cnn_forward.3} parent=5 // pred_check
      _
    $region26: #{simple_cnn_forward.3} parent=5 // pred_check_branch
      %128 = sbr.rel (%p125) target = $region28
    $region27: #{simple_cnn_forward.3} parent=5 // pred_region
      %s129 = ssub.s32 %s8, 1
      %s130 = smul.u32 32, %s13
      %p131 = scmp.lt.s32.totalorder %s130, 63
      %s132 = scalar_select %p131, %s130, 63
      %s133 = smul.addr %s132, 2
      %s134 = scalar_lea.vmem %s0, %s133
      %p135 = pneg %p34
      %p136 = pneg %p31
      %s137 = smul.u32 512, %s13
      %p138 = scmp.lt.s32.totalorder %s137, 1023
      %s139 = scalar_select %p138, %s137, 1023
      %s140 = smul.addr %s139, 8
      %s141 = scalar_lea.vmem %s1, %s140
      %p142 = pneg %p60
      %p143 = pneg %p57
      %p144 = pneg %p86
      %p145 = pneg %p83
      %p146 = scmp.lt.s32.totalorder %s13, 1
      %s147 = scalar_select %p146, %s13, 1
      %s148 = smul.addr %s147, 2
      %s149 = scalar_lea.vmem %s2, %s148
      %s150 = smul.u32 32, %s13
      %p151 = scmp.lt.s32.totalorder %s150, 63
      %s152 = scalar_select %p151, %s150, 63
      %s153 = smul.addr %s152, 2
      %s154 = scalar_lea.vmem %s0, %s153
      %s155 = smul.u32 32, %s13
      %s156 = smul.u32 512, %s13
      %p157 = scmp.lt.s32.totalorder %s156, 1023
      %s158 = scalar_select %p157, %s156, 1023
      %s159 = smul.addr %s158, 8
      %s160 = scalar_lea.vmem %s1, %s159
      %s161 = smul.u32 512, %s13
      %p162 = scmp.lt.s32.totalorder %s13, 1
      %s163 = scalar_select %p162, %s13, 1
      %s164 = smul.addr %s163, 2
      %s165 = scalar_lea.vmem %s2, %s164
      %v166 = vld [vmem:[%s154] sm:$0xff]
      %v167 = vld [vmem:[%s154 + $0x8] sm:$0xff]
      %v168 = vld [vmem:[%s154 + $0x10] sm:$0xff]
      %v169 = vld [vmem:[%s154 + $0x18] sm:$0xff]
      %v170 = vld [vmem:[%s154 + $0x20] sm:$0xff]
      %v171 = vld [vmem:[%s154 + $0x28] sm:$0xff]
      %v172 = vld [vmem:[%s154 + $0x30] sm:$0xff]
      %v173 = vld [vmem:[%s154 + $0x38] sm:$0xff]
      %v174 = vld [vmem:[%s160] sm:$0xff]
      %v175 = vld [vmem:[%s160 + $0x8] sm:$0xff]
      %v176 = vld [vmem:[%s160 + $0x10] sm:$0xff]
      %v177 = vld [vmem:[%s160 + $0x18] sm:$0xff]
      %v178 = vld [vmem:[%s160 + $0x20] sm:$0xff]
      %v179 = vld [vmem:[%s160 + $0x28] sm:$0xff]
      %v180 = vld [vmem:[%s160 + $0x30] sm:$0xff]
      %v181 = vld [vmem:[%s160 + $0x38] sm:$0xff]
      %v182 = vld [vmem:[%s160 + $0x40] sm:$0xff]
      %v183 = vld [vmem:[%s160 + $0x48] sm:$0xff]
      %v184 = vld [vmem:[%s160 + $0x50] sm:$0xff]
      %v185 = vld [vmem:[%s160 + $0x58] sm:$0xff]
      %v186 = vld [vmem:[%s160 + $0x60] sm:$0xff]
      %v187 = vld [vmem:[%s160 + $0x68] sm:$0xff]
      %v188 = vld [vmem:[%s160 + $0x70] sm:$0xff]
      %v189 = vld [vmem:[%s160 + $0x78] sm:$0xff]
      %v190 = vld [vmem:[%s160 + $0x80] sm:$0xff]
      %v191 = vld [vmem:[%s160 + $0x88] sm:$0xff]
      %v192 = vld [vmem:[%s160 + $0x90] sm:$0xff]
      %v193 = vld [vmem:[%s160 + $0x98] sm:$0xff]
      %v194 = vld [vmem:[%s160 + $0xa0] sm:$0xff]
      %v195 = vld [vmem:[%s160 + $0xa8] sm:$0xff]
      %v196 = vld [vmem:[%s160 + $0xb0] sm:$0xff]
      %v197 = vld [vmem:[%s160 + $0xb8] sm:$0xff]
      %v198 = vld [vmem:[%s160 + $0xc0] sm:$0xff]
      %v199 = vld [vmem:[%s160 + $0xc8] sm:$0xff]
      %v200 = vld [vmem:[%s160 + $0xd0] sm:$0xff]
      %v201 = vld [vmem:[%s160 + $0xd8] sm:$0xff]
      %v202 = vld [vmem:[%s160 + $0xe0] sm:$0xff]
      %v203 = vld [vmem:[%s160 + $0xe8] sm:$0xff]
      %v204 = vld [vmem:[%s160 + $0xf0] sm:$0xff]
      %v205 = vld [vmem:[%s160 + $0xf8] sm:$0xff]
      %v206 = vld [vmem:[%s160 + $0x100] sm:$0xff]
      %v207 = vld [vmem:[%s160 + $0x108] sm:$0xff]
      %v208 = vld [vmem:[%s160 + $0x110] sm:$0xff]
      %v209 = vld [vmem:[%s160 + $0x118] sm:$0xff]
      %v210 = vld [vmem:[%s160 + $0x120] sm:$0xff]
      %v211 = vld [vmem:[%s160 + $0x128] sm:$0xff]
      %v212 = vld [vmem:[%s160 + $0x130] sm:$0xff]
      %v213 = vld [vmem:[%s160 + $0x138] sm:$0xff]
      %v214 = vld [vmem:[%s160 + $0x140] sm:$0xff]
      %v215 = vld [vmem:[%s160 + $0x148] sm:$0xff]
      %v216 = vld [vmem:[%s160 + $0x150] sm:$0xff]
      %v217 = vld [vmem:[%s160 + $0x158] sm:$0xff]
      %v218 = vld [vmem:[%s160 + $0x160] sm:$0xff]
      %v219 = vld [vmem:[%s160 + $0x168] sm:$0xff]
      %v220 = vld [vmem:[%s160 + $0x170] sm:$0xff]
      %v221 = vld [vmem:[%s160 + $0x178] sm:$0xff]
      %v222 = vld [vmem:[%s160 + $0x180] sm:$0xff]
      %v223 = vld [vmem:[%s160 + $0x188] sm:$0xff]
      %v224 = vld [vmem:[%s160 + $0x190] sm:$0xff]
      %v225 = vld [vmem:[%s160 + $0x198] sm:$0xff]
      %v226 = vld [vmem:[%s160 + $0x1a0] sm:$0xff]
      %v227 = vld [vmem:[%s160 + $0x1a8] sm:$0xff]
      %v228 = vld [vmem:[%s160 + $0x1b0] sm:$0xff]
      %v229 = vld [vmem:[%s160 + $0x1b8] sm:$0xff]
      %v230 = vld [vmem:[%s160 + $0x1c0] sm:$0xff]
      %v231 = vld [vmem:[%s160 + $0x1c8] sm:$0xff]
      %v232 = vld [vmem:[%s160 + $0x1d0] sm:$0xff]
      %v233 = vld [vmem:[%s160 + $0x1d8] sm:$0xff]
      %v234 = vld [vmem:[%s160 + $0x1e0] sm:$0xff]
      %v235 = vld [vmem:[%s160 + $0x1e8] sm:$0xff]
      %v236 = vld [vmem:[%s160 + $0x1f0] sm:$0xff]
      %v237 = vld [vmem:[%s160 + $0x1f8] sm:$0xff]
      %v238 = vld [vmem:[%s160 + $0x200] sm:$0xff]
      %v239 = vld [vmem:[%s160 + $0x208] sm:$0xff]
      %v240 = vld [vmem:[%s160 + $0x210] sm:$0xff]
      %v241 = vld [vmem:[%s160 + $0x218] sm:$0xff]
      %v242 = vld [vmem:[%s160 + $0x220] sm:$0xff]
      %v243 = vld [vmem:[%s160 + $0x228] sm:$0xff]
      %v244 = vld [vmem:[%s160 + $0x230] sm:$0xff]
      %v245 = vld [vmem:[%s160 + $0x238] sm:$0xff]
      %v246 = vld [vmem:[%s160 + $0x240] sm:$0xff]
      %v247 = vld [vmem:[%s160 + $0x248] sm:$0xff]
      %v248 = vld [vmem:[%s160 + $0x250] sm:$0xff]
      %v249 = vld [vmem:[%s160 + $0x258] sm:$0xff]
      %v250 = vld [vmem:[%s160 + $0x260] sm:$0xff]
      %v251 = vld [vmem:[%s160 + $0x268] sm:$0xff]
      %v252 = vld [vmem:[%s160 + $0x270] sm:$0xff]
      %v253 = vld [vmem:[%s160 + $0x278] sm:$0xff]
      %v254 = vld [vmem:[%s160 + $0x280] sm:$0xff]
      %v255 = vld [vmem:[%s160 + $0x288] sm:$0xff]
      %v256 = vld [vmem:[%s160 + $0x290] sm:$0xff]
      %v257 = vld [vmem:[%s160 + $0x298] sm:$0xff]
      %v258 = vld [vmem:[%s160 + $0x2a0] sm:$0xff]
      %v259 = vld [vmem:[%s160 + $0x2a8] sm:$0xff]
      %v260 = vld [vmem:[%s160 + $0x2b0] sm:$0xff]
      %v261 = vld [vmem:[%s160 + $0x2b8] sm:$0xff]
      %v262 = vld [vmem:[%s160 + $0x2c0] sm:$0xff]
      %v263 = vld [vmem:[%s160 + $0x2c8] sm:$0xff]
      %v264 = vld [vmem:[%s160 + $0x2d0] sm:$0xff]
      %v265 = vld [vmem:[%s160 + $0x2d8] sm:$0xff]
      %v266 = vld [vmem:[%s160 + $0x2e0] sm:$0xff]
      %v267 = vld [vmem:[%s160 + $0x2e8] sm:$0xff]
      %v268 = vld [vmem:[%s160 + $0x2f0] sm:$0xff]
      %v269 = vld [vmem:[%s160 + $0x2f8] sm:$0xff]
      %v270 = vld [vmem:[%s160 + $0x300] sm:$0xff]
      %v271 = vld [vmem:[%s160 + $0x308] sm:$0xff]
      %v272 = vld [vmem:[%s160 + $0x310] sm:$0xff]
      %v273 = vld [vmem:[%s160 + $0x318] sm:$0xff]
      %v274 = vld [vmem:[%s160 + $0x320] sm:$0xff]
      %v275 = vld [vmem:[%s160 + $0x328] sm:$0xff]
      %v276 = vld [vmem:[%s160 + $0x330] sm:$0xff]
      %v277 = vld [vmem:[%s160 + $0x338] sm:$0xff]
      %v278 = vld [vmem:[%s160 + $0x340] sm:$0xff]
      %v279 = vld [vmem:[%s160 + $0x348] sm:$0xff]
      %v280 = vld [vmem:[%s160 + $0x350] sm:$0xff]
      %v281 = vld [vmem:[%s160 + $0x358] sm:$0xff]
      %v282 = vld [vmem:[%s160 + $0x360] sm:$0xff]
      %v283 = vld [vmem:[%s160 + $0x368] sm:$0xff]
      %v284 = vld [vmem:[%s160 + $0x370] sm:$0xff]
      %v285 = vld [vmem:[%s160 + $0x378] sm:$0xff]
      %v286 = vld [vmem:[%s160 + $0x380] sm:$0xff]
      %v287 = vld [vmem:[%s160 + $0x388] sm:$0xff]
      %v288 = vld [vmem:[%s160 + $0x390] sm:$0xff]
      %v289 = vld [vmem:[%s160 + $0x398] sm:$0xff]
      %v290 = vld [vmem:[%s160 + $0x3a0] sm:$0xff]
      %v291 = vld [vmem:[%s160 + $0x3a8] sm:$0xff]
      %v292 = vld [vmem:[%s160 + $0x3b0] sm:$0xff]
      %v293 = vld [vmem:[%s160 + $0x3b8] sm:$0xff]
      %v294 = vld [vmem:[%s160 + $0x3c0] sm:$0xff]
      %v295 = vld [vmem:[%s160 + $0x3c8] sm:$0xff]
      %v296 = vld [vmem:[%s160 + $0x3d0] sm:$0xff]
      %v297 = vld [vmem:[%s160 + $0x3d8] sm:$0xff]
      %v298 = vld [vmem:[%s160 + $0x3e0] sm:$0xff]
      %v299 = vld [vmem:[%s160 + $0x3e8] sm:$0xff]
      %v300 = vld [vmem:[%s160 + $0x3f0] sm:$0xff]
      %v301 = vld [vmem:[%s160 + $0x3f8] sm:$0xff]
      %v302 = vld [vmem:[%s160 + $0x400] sm:$0xff]
      %v303 = vld [vmem:[%s160 + $0x408] sm:$0xff]
      %v304 = vld [vmem:[%s160 + $0x410] sm:$0xff]
      %v305 = vld [vmem:[%s160 + $0x418] sm:$0xff]
      %v306 = vld [vmem:[%s160 + $0x420] sm:$0xff]
      %v307 = vld [vmem:[%s160 + $0x428] sm:$0xff]
      %v308 = vld [vmem:[%s160 + $0x430] sm:$0xff]
      %v309 = vld [vmem:[%s160 + $0x438] sm:$0xff]
      %v310 = vld [vmem:[%s160 + $0x440] sm:$0xff]
      %v311 = vld [vmem:[%s160 + $0x448] sm:$0xff]
      %v312 = vld [vmem:[%s160 + $0x450] sm:$0xff]
      %v313 = vld [vmem:[%s160 + $0x458] sm:$0xff]
      %v314 = vld [vmem:[%s160 + $0x460] sm:$0xff]
      %v315 = vld [vmem:[%s160 + $0x468] sm:$0xff]
      %v316 = vld [vmem:[%s160 + $0x470] sm:$0xff]
      %v317 = vld [vmem:[%s160 + $0x478] sm:$0xff]
      %v318 = vld [vmem:[%s160 + $0x480] sm:$0xff]
      %v319 = vld [vmem:[%s160 + $0x488] sm:$0xff]
      %v320 = vld [vmem:[%s160 + $0x490] sm:$0xff]
      %v321 = vld [vmem:[%s160 + $0x498] sm:$0xff]
      %v322 = vld [vmem:[%s160 + $0x4a0] sm:$0xff]
      %v323 = vld [vmem:[%s160 + $0x4a8] sm:$0xff]
      %v324 = vld [vmem:[%s160 + $0x4b0] sm:$0xff]
      %v325 = vld [vmem:[%s160 + $0x4b8] sm:$0xff]
      %v326 = vld [vmem:[%s160 + $0x4c0] sm:$0xff]
      %v327 = vld [vmem:[%s160 + $0x4c8] sm:$0xff]
      %v328 = vld [vmem:[%s160 + $0x4d0] sm:$0xff]
      %v329 = vld [vmem:[%s160 + $0x4d8] sm:$0xff]
      %v330 = vld [vmem:[%s160 + $0x4e0] sm:$0xff]
      %v331 = vld [vmem:[%s160 + $0x4e8] sm:$0xff]
      %v332 = vld [vmem:[%s160 + $0x4f0] sm:$0xff]
      %v333 = vld [vmem:[%s160 + $0x4f8] sm:$0xff]
      %v334 = vld [vmem:[%s160 + $0x500] sm:$0xff]
      %v335 = vld [vmem:[%s160 + $0x508] sm:$0xff]
      %v336 = vld [vmem:[%s160 + $0x510] sm:$0xff]
      %v337 = vld [vmem:[%s160 + $0x518] sm:$0xff]
      %v338 = vld [vmem:[%s160 + $0x520] sm:$0xff]
      %v339 = vld [vmem:[%s160 + $0x528] sm:$0xff]
      %v340 = vld [vmem:[%s160 + $0x530] sm:$0xff]
      %v341 = vld [vmem:[%s160 + $0x538] sm:$0xff]
      %v342 = vld [vmem:[%s160 + $0x540] sm:$0xff]
      %v343 = vld [vmem:[%s160 + $0x548] sm:$0xff]
      %v344 = vld [vmem:[%s160 + $0x550] sm:$0xff]
      %v345 = vld [vmem:[%s160 + $0x558] sm:$0xff]
      %v346 = vld [vmem:[%s160 + $0x560] sm:$0xff]
      %v347 = vld [vmem:[%s160 + $0x568] sm:$0xff]
      %v348 = vld [vmem:[%s160 + $0x570] sm:$0xff]
      %v349 = vld [vmem:[%s160 + $0x578] sm:$0xff]
      %v350 = vld [vmem:[%s160 + $0x580] sm:$0xff]
      %v351 = vld [vmem:[%s160 + $0x588] sm:$0xff]
      %v352 = vld [vmem:[%s160 + $0x590] sm:$0xff]
      %v353 = vld [vmem:[%s160 + $0x598] sm:$0xff]
      %v354 = vld [vmem:[%s160 + $0x5a0] sm:$0xff]
      %v355 = vld [vmem:[%s160 + $0x5a8] sm:$0xff]
      %v356 = vld [vmem:[%s160 + $0x5b0] sm:$0xff]
      %v357 = vld [vmem:[%s160 + $0x5b8] sm:$0xff]
      %v358 = vld [vmem:[%s160 + $0x5c0] sm:$0xff]
      %v359 = vld [vmem:[%s160 + $0x5c8] sm:$0xff]
      %v360 = vld [vmem:[%s160 + $0x5d0] sm:$0xff]
      %v361 = vld [vmem:[%s160 + $0x5d8] sm:$0xff]
      %v362 = vld [vmem:[%s160 + $0x5e0] sm:$0xff]
      %v363 = vld [vmem:[%s160 + $0x5e8] sm:$0xff]
      %v364 = vld [vmem:[%s160 + $0x5f0] sm:$0xff]
      %v365 = vld [vmem:[%s160 + $0x5f8] sm:$0xff]
      %v366 = vld [vmem:[%s160 + $0x600] sm:$0xff]
      %v367 = vld [vmem:[%s160 + $0x608] sm:$0xff]
      %v368 = vld [vmem:[%s160 + $0x610] sm:$0xff]
      %v369 = vld [vmem:[%s160 + $0x618] sm:$0xff]
      %v370 = vld [vmem:[%s160 + $0x620] sm:$0xff]
      %v371 = vld [vmem:[%s160 + $0x628] sm:$0xff]
      %v372 = vld [vmem:[%s160 + $0x630] sm:$0xff]
      %v373 = vld [vmem:[%s160 + $0x638] sm:$0xff]
      %v374 = vld [vmem:[%s160 + $0x640] sm:$0xff]
      %v375 = vld [vmem:[%s160 + $0x648] sm:$0xff]
      %v376 = vld [vmem:[%s160 + $0x650] sm:$0xff]
      %v377 = vld [vmem:[%s160 + $0x658] sm:$0xff]
      %v378 = vld [vmem:[%s160 + $0x660] sm:$0xff]
      %v379 = vld [vmem:[%s160 + $0x668] sm:$0xff]
      %v380 = vld [vmem:[%s160 + $0x670] sm:$0xff]
      %v381 = vld [vmem:[%s160 + $0x678] sm:$0xff]
      %v382 = vld [vmem:[%s160 + $0x680] sm:$0xff]
      %v383 = vld [vmem:[%s160 + $0x688] sm:$0xff]
      %v384 = vld [vmem:[%s160 + $0x690] sm:$0xff]
      %v385 = vld [vmem:[%s160 + $0x698] sm:$0xff]
      %v386 = vld [vmem:[%s160 + $0x6a0] sm:$0xff]
      %v387 = vld [vmem:[%s160 + $0x6a8] sm:$0xff]
      %v388 = vld [vmem:[%s160 + $0x6b0] sm:$0xff]
      %v389 = vld [vmem:[%s160 + $0x6b8] sm:$0xff]
      %v390 = vld [vmem:[%s160 + $0x6c0] sm:$0xff]
      %v391 = vld [vmem:[%s160 + $0x6c8] sm:$0xff]
      %v392 = vld [vmem:[%s160 + $0x6d0] sm:$0xff]
      %v393 = vld [vmem:[%s160 + $0x6d8] sm:$0xff]
      %v394 = vld [vmem:[%s160 + $0x6e0] sm:$0xff]
      %v395 = vld [vmem:[%s160 + $0x6e8] sm:$0xff]
      %v396 = vld [vmem:[%s160 + $0x6f0] sm:$0xff]
      %v397 = vld [vmem:[%s160 + $0x6f8] sm:$0xff]
      %v398 = vld [vmem:[%s160 + $0x700] sm:$0xff]
      %v399 = vld [vmem:[%s160 + $0x708] sm:$0xff]
      %v400 = vld [vmem:[%s160 + $0x710] sm:$0xff]
      %v401 = vld [vmem:[%s160 + $0x718] sm:$0xff]
      %v402 = vld [vmem:[%s160 + $0x720] sm:$0xff]
      %v403 = vld [vmem:[%s160 + $0x728] sm:$0xff]
      %v404 = vld [vmem:[%s160 + $0x730] sm:$0xff]
      %v405 = vld [vmem:[%s160 + $0x738] sm:$0xff]
      %v406 = vld [vmem:[%s160 + $0x740] sm:$0xff]
      %v407 = vld [vmem:[%s160 + $0x748] sm:$0xff]
      %v408 = vld [vmem:[%s160 + $0x750] sm:$0xff]
      %v409 = vld [vmem:[%s160 + $0x758] sm:$0xff]
      %v410 = vld [vmem:[%s160 + $0x760] sm:$0xff]
      %v411 = vld [vmem:[%s160 + $0x768] sm:$0xff]
      %v412 = vld [vmem:[%s160 + $0x770] sm:$0xff]
      %v413 = vld [vmem:[%s160 + $0x778] sm:$0xff]
      %v414 = vld [vmem:[%s160 + $0x780] sm:$0xff]
      %v415 = vld [vmem:[%s160 + $0x788] sm:$0xff]
      %v416 = vld [vmem:[%s160 + $0x790] sm:$0xff]
      %v417 = vld [vmem:[%s160 + $0x798] sm:$0xff]
      %v418 = vld [vmem:[%s160 + $0x7a0] sm:$0xff]
      %v419 = vld [vmem:[%s160 + $0x7a8] sm:$0xff]
      %v420 = vld [vmem:[%s160 + $0x7b0] sm:$0xff]
      %v421 = vld [vmem:[%s160 + $0x7b8] sm:$0xff]
      %v422 = vld [vmem:[%s160 + $0x7c0] sm:$0xff]
      %v423 = vld [vmem:[%s160 + $0x7c8] sm:$0xff]
      %v424 = vld [vmem:[%s160 + $0x7d0] sm:$0xff]
      %v425 = vld [vmem:[%s160 + $0x7d8] sm:$0xff]
      %v426 = vld [vmem:[%s160 + $0x7e0] sm:$0xff]
      %v427 = vld [vmem:[%s160 + $0x7e8] sm:$0xff]
      %v428 = vld [vmem:[%s160 + $0x7f0] sm:$0xff]
      %v429 = vld [vmem:[%s160 + $0x7f8] sm:$0xff]
      %v430 = vld [vmem:[%s160 + $0x800] sm:$0xff]
      %v431 = vld [vmem:[%s160 + $0x808] sm:$0xff]
      %v432 = vld [vmem:[%s160 + $0x810] sm:$0xff]
      %v433 = vld [vmem:[%s160 + $0x818] sm:$0xff]
      %v434 = vld [vmem:[%s160 + $0x820] sm:$0xff]
      %v435 = vld [vmem:[%s160 + $0x828] sm:$0xff]
      %v436 = vld [vmem:[%s160 + $0x830] sm:$0xff]
      %v437 = vld [vmem:[%s160 + $0x838] sm:$0xff]
      %v438 = vld [vmem:[%s160 + $0x840] sm:$0xff]
      %v439 = vld [vmem:[%s160 + $0x848] sm:$0xff]
      %v440 = vld [vmem:[%s160 + $0x850] sm:$0xff]
      %v441 = vld [vmem:[%s160 + $0x858] sm:$0xff]
      %v442 = vld [vmem:[%s160 + $0x860] sm:$0xff]
      %v443 = vld [vmem:[%s160 + $0x868] sm:$0xff]
      %v444 = vld [vmem:[%s160 + $0x870] sm:$0xff]
      %v445 = vld [vmem:[%s160 + $0x878] sm:$0xff]
      %v446 = vld [vmem:[%s160 + $0x880] sm:$0xff]
      %v447 = vld [vmem:[%s160 + $0x888] sm:$0xff]
      %v448 = vld [vmem:[%s160 + $0x890] sm:$0xff]
      %v449 = vld [vmem:[%s160 + $0x898] sm:$0xff]
      %v450 = vld [vmem:[%s160 + $0x8a0] sm:$0xff]
      %v451 = vld [vmem:[%s160 + $0x8a8] sm:$0xff]
      %v452 = vld [vmem:[%s160 + $0x8b0] sm:$0xff]
      %v453 = vld [vmem:[%s160 + $0x8b8] sm:$0xff]
      %v454 = vld [vmem:[%s160 + $0x8c0] sm:$0xff]
      %v455 = vld [vmem:[%s160 + $0x8c8] sm:$0xff]
      %v456 = vld [vmem:[%s160 + $0x8d0] sm:$0xff]
      %v457 = vld [vmem:[%s160 + $0x8d8] sm:$0xff]
      %v458 = vld [vmem:[%s160 + $0x8e0] sm:$0xff]
      %v459 = vld [vmem:[%s160 + $0x8e8] sm:$0xff]
      %v460 = vld [vmem:[%s160 + $0x8f0] sm:$0xff]
      %v461 = vld [vmem:[%s160 + $0x8f8] sm:$0xff]
      %v462 = vld [vmem:[%s160 + $0x900] sm:$0xff]
      %v463 = vld [vmem:[%s160 + $0x908] sm:$0xff]
      %v464 = vld [vmem:[%s160 + $0x910] sm:$0xff]
      %v465 = vld [vmem:[%s160 + $0x918] sm:$0xff]
      %v466 = vld [vmem:[%s160 + $0x920] sm:$0xff]
      %v467 = vld [vmem:[%s160 + $0x928] sm:$0xff]
      %v468 = vld [vmem:[%s160 + $0x930] sm:$0xff]
      %v469 = vld [vmem:[%s160 + $0x938] sm:$0xff]
      %v470 = vld [vmem:[%s160 + $0x940] sm:$0xff]
      %v471 = vld [vmem:[%s160 + $0x948] sm:$0xff]
      %v472 = vld [vmem:[%s160 + $0x950] sm:$0xff]
      %v473 = vld [vmem:[%s160 + $0x958] sm:$0xff]
      %v474 = vld [vmem:[%s160 + $0x960] sm:$0xff]
      %v475 = vld [vmem:[%s160 + $0x968] sm:$0xff]
      %v476 = vld [vmem:[%s160 + $0x970] sm:$0xff]
      %v477 = vld [vmem:[%s160 + $0x978] sm:$0xff]
      %v478 = vld [vmem:[%s160 + $0x980] sm:$0xff]
      %v479 = vld [vmem:[%s160 + $0x988] sm:$0xff]
      %v480 = vld [vmem:[%s160 + $0x990] sm:$0xff]
      %v481 = vld [vmem:[%s160 + $0x998] sm:$0xff]
      %v482 = vld [vmem:[%s160 + $0x9a0] sm:$0xff]
      %v483 = vld [vmem:[%s160 + $0x9a8] sm:$0xff]
      %v484 = vld [vmem:[%s160 + $0x9b0] sm:$0xff]
      %v485 = vld [vmem:[%s160 + $0x9b8] sm:$0xff]
      %v486 = vld [vmem:[%s160 + $0x9c0] sm:$0xff]
      %v487 = vld [vmem:[%s160 + $0x9c8] sm:$0xff]
      %v488 = vld [vmem:[%s160 + $0x9d0] sm:$0xff]
      %v489 = vld [vmem:[%s160 + $0x9d8] sm:$0xff]
      %v490 = vld [vmem:[%s160 + $0x9e0] sm:$0xff]
      %v491 = vld [vmem:[%s160 + $0x9e8] sm:$0xff]
      %v492 = vld [vmem:[%s160 + $0x9f0] sm:$0xff]
      %v493 = vld [vmem:[%s160 + $0x9f8] sm:$0xff]
      %v494 = vld [vmem:[%s160 + $0xa00] sm:$0xff]
      %v495 = vld [vmem:[%s160 + $0xa08] sm:$0xff]
      %v496 = vld [vmem:[%s160 + $0xa10] sm:$0xff]
      %v497 = vld [vmem:[%s160 + $0xa18] sm:$0xff]
      %v498 = vld [vmem:[%s160 + $0xa20] sm:$0xff]
      %v499 = vld [vmem:[%s160 + $0xa28] sm:$0xff]
      %v500 = vld [vmem:[%s160 + $0xa30] sm:$0xff]
      %v501 = vld [vmem:[%s160 + $0xa38] sm:$0xff]
      %v502 = vld [vmem:[%s160 + $0xa40] sm:$0xff]
      %v503 = vld [vmem:[%s160 + $0xa48] sm:$0xff]
      %v504 = vld [vmem:[%s160 + $0xa50] sm:$0xff]
      %v505 = vld [vmem:[%s160 + $0xa58] sm:$0xff]
      %v506 = vld [vmem:[%s160 + $0xa60] sm:$0xff]
      %v507 = vld [vmem:[%s160 + $0xa68] sm:$0xff]
      %v508 = vld [vmem:[%s160 + $0xa70] sm:$0xff]
      %v509 = vld [vmem:[%s160 + $0xa78] sm:$0xff]
      %v510 = vld [vmem:[%s160 + $0xa80] sm:$0xff]
      %v511 = vld [vmem:[%s160 + $0xa88] sm:$0xff]
      %v512 = vld [vmem:[%s160 + $0xa90] sm:$0xff]
      %v513 = vld [vmem:[%s160 + $0xa98] sm:$0xff]
      %v514 = vld [vmem:[%s160 + $0xaa0] sm:$0xff]
      %v515 = vld [vmem:[%s160 + $0xaa8] sm:$0xff]
      %v516 = vld [vmem:[%s160 + $0xab0] sm:$0xff]
      %v517 = vld [vmem:[%s160 + $0xab8] sm:$0xff]
      %v518 = vld [vmem:[%s160 + $0xac0] sm:$0xff]
      %v519 = vld [vmem:[%s160 + $0xac8] sm:$0xff]
      %v520 = vld [vmem:[%s160 + $0xad0] sm:$0xff]
      %v521 = vld [vmem:[%s160 + $0xad8] sm:$0xff]
      %v522 = vld [vmem:[%s160 + $0xae0] sm:$0xff]
      %v523 = vld [vmem:[%s160 + $0xae8] sm:$0xff]
      %v524 = vld [vmem:[%s160 + $0xaf0] sm:$0xff]
      %v525 = vld [vmem:[%s160 + $0xaf8] sm:$0xff]
      %v526 = vld [vmem:[%s160 + $0xb00] sm:$0xff]
      %v527 = vld [vmem:[%s160 + $0xb08] sm:$0xff]
      %v528 = vld [vmem:[%s160 + $0xb10] sm:$0xff]
      %v529 = vld [vmem:[%s160 + $0xb18] sm:$0xff]
      %v530 = vld [vmem:[%s160 + $0xb20] sm:$0xff]
      %v531 = vld [vmem:[%s160 + $0xb28] sm:$0xff]
      %v532 = vld [vmem:[%s160 + $0xb30] sm:$0xff]
      %v533 = vld [vmem:[%s160 + $0xb38] sm:$0xff]
      %v534 = vld [vmem:[%s160 + $0xb40] sm:$0xff]
      %v535 = vld [vmem:[%s160 + $0xb48] sm:$0xff]
      %v536 = vld [vmem:[%s160 + $0xb50] sm:$0xff]
      %v537 = vld [vmem:[%s160 + $0xb58] sm:$0xff]
      %v538 = vld [vmem:[%s160 + $0xb60] sm:$0xff]
      %v539 = vld [vmem:[%s160 + $0xb68] sm:$0xff]
      %v540 = vld [vmem:[%s160 + $0xb70] sm:$0xff]
      %v541 = vld [vmem:[%s160 + $0xb78] sm:$0xff]
      %v542 = vld [vmem:[%s160 + $0xb80] sm:$0xff]
      %v543 = vld [vmem:[%s160 + $0xb88] sm:$0xff]
      %v544 = vld [vmem:[%s160 + $0xb90] sm:$0xff]
      %v545 = vld [vmem:[%s160 + $0xb98] sm:$0xff]
      %v546 = vld [vmem:[%s160 + $0xba0] sm:$0xff]
      %v547 = vld [vmem:[%s160 + $0xba8] sm:$0xff]
      %v548 = vld [vmem:[%s160 + $0xbb0] sm:$0xff]
      %v549 = vld [vmem:[%s160 + $0xbb8] sm:$0xff]
      %v550 = vld [vmem:[%s160 + $0xbc0] sm:$0xff]
      %v551 = vld [vmem:[%s160 + $0xbc8] sm:$0xff]
      %v552 = vld [vmem:[%s160 + $0xbd0] sm:$0xff]
      %v553 = vld [vmem:[%s160 + $0xbd8] sm:$0xff]
      %v554 = vld [vmem:[%s160 + $0xbe0] sm:$0xff]
      %v555 = vld [vmem:[%s160 + $0xbe8] sm:$0xff]
      %v556 = vld [vmem:[%s160 + $0xbf0] sm:$0xff]
      %v557 = vld [vmem:[%s160 + $0xbf8] sm:$0xff]
      %v558 = vld [vmem:[%s160 + $0xc00] sm:$0xff]
      %v559 = vld [vmem:[%s160 + $0xc08] sm:$0xff]
      %v560 = vld [vmem:[%s160 + $0xc10] sm:$0xff]
      %v561 = vld [vmem:[%s160 + $0xc18] sm:$0xff]
      %v562 = vld [vmem:[%s160 + $0xc20] sm:$0xff]
      %v563 = vld [vmem:[%s160 + $0xc28] sm:$0xff]
      %v564 = vld [vmem:[%s160 + $0xc30] sm:$0xff]
      %v565 = vld [vmem:[%s160 + $0xc38] sm:$0xff]
      %v566 = vld [vmem:[%s160 + $0xc40] sm:$0xff]
      %v567 = vld [vmem:[%s160 + $0xc48] sm:$0xff]
      %v568 = vld [vmem:[%s160 + $0xc50] sm:$0xff]
      %v569 = vld [vmem:[%s160 + $0xc58] sm:$0xff]
      %v570 = vld [vmem:[%s160 + $0xc60] sm:$0xff]
      %v571 = vld [vmem:[%s160 + $0xc68] sm:$0xff]
      %v572 = vld [vmem:[%s160 + $0xc70] sm:$0xff]
      %v573 = vld [vmem:[%s160 + $0xc78] sm:$0xff]
      %v574 = vld [vmem:[%s160 + $0xc80] sm:$0xff]
      %v575 = vld [vmem:[%s160 + $0xc88] sm:$0xff]
      %v576 = vld [vmem:[%s160 + $0xc90] sm:$0xff]
      %v577 = vld [vmem:[%s160 + $0xc98] sm:$0xff]
      %v578 = vld [vmem:[%s160 + $0xca0] sm:$0xff]
      %v579 = vld [vmem:[%s160 + $0xca8] sm:$0xff]
      %v580 = vld [vmem:[%s160 + $0xcb0] sm:$0xff]
      %v581 = vld [vmem:[%s160 + $0xcb8] sm:$0xff]
      %v582 = vld [vmem:[%s160 + $0xcc0] sm:$0xff]
      %v583 = vld [vmem:[%s160 + $0xcc8] sm:$0xff]
      %v584 = vld [vmem:[%s160 + $0xcd0] sm:$0xff]
      %v585 = vld [vmem:[%s160 + $0xcd8] sm:$0xff]
      %v586 = vld [vmem:[%s160 + $0xce0] sm:$0xff]
      %v587 = vld [vmem:[%s160 + $0xce8] sm:$0xff]
      %v588 = vld [vmem:[%s160 + $0xcf0] sm:$0xff]
      %v589 = vld [vmem:[%s160 + $0xcf8] sm:$0xff]
      %v590 = vld [vmem:[%s160 + $0xd00] sm:$0xff]
      %v591 = vld [vmem:[%s160 + $0xd08] sm:$0xff]
      %v592 = vld [vmem:[%s160 + $0xd10] sm:$0xff]
      %v593 = vld [vmem:[%s160 + $0xd18] sm:$0xff]
      %v594 = vld [vmem:[%s160 + $0xd20] sm:$0xff]
      %v595 = vld [vmem:[%s160 + $0xd28] sm:$0xff]
      %v596 = vld [vmem:[%s160 + $0xd30] sm:$0xff]
      %v597 = vld [vmem:[%s160 + $0xd38] sm:$0xff]
      %v598 = vld [vmem:[%s160 + $0xd40] sm:$0xff]
      %v599 = vld [vmem:[%s160 + $0xd48] sm:$0xff]
      %v600 = vld [vmem:[%s160 + $0xd50] sm:$0xff]
      %v601 = vld [vmem:[%s160 + $0xd58] sm:$0xff]
      %v602 = vld [vmem:[%s160 + $0xd60] sm:$0xff]
      %v603 = vld [vmem:[%s160 + $0xd68] sm:$0xff]
      %v604 = vld [vmem:[%s160 + $0xd70] sm:$0xff]
      %v605 = vld [vmem:[%s160 + $0xd78] sm:$0xff]
      %v606 = vld [vmem:[%s160 + $0xd80] sm:$0xff]
      %v607 = vld [vmem:[%s160 + $0xd88] sm:$0xff]
      %v608 = vld [vmem:[%s160 + $0xd90] sm:$0xff]
      %v609 = vld [vmem:[%s160 + $0xd98] sm:$0xff]
      %v610 = vld [vmem:[%s160 + $0xda0] sm:$0xff]
      %v611 = vld [vmem:[%s160 + $0xda8] sm:$0xff]
      %v612 = vld [vmem:[%s160 + $0xdb0] sm:$0xff]
      %v613 = vld [vmem:[%s160 + $0xdb8] sm:$0xff]
      %v614 = vld [vmem:[%s160 + $0xdc0] sm:$0xff]
      %v615 = vld [vmem:[%s160 + $0xdc8] sm:$0xff]
      %v616 = vld [vmem:[%s160 + $0xdd0] sm:$0xff]
      %v617 = vld [vmem:[%s160 + $0xdd8] sm:$0xff]
      %v618 = vld [vmem:[%s160 + $0xde0] sm:$0xff]
      %v619 = vld [vmem:[%s160 + $0xde8] sm:$0xff]
      %v620 = vld [vmem:[%s160 + $0xdf0] sm:$0xff]
      %v621 = vld [vmem:[%s160 + $0xdf8] sm:$0xff]
      %v622 = vld [vmem:[%s160 + $0xe00] sm:$0xff]
      %v623 = vld [vmem:[%s160 + $0xe08] sm:$0xff]
      %v624 = vld [vmem:[%s160 + $0xe10] sm:$0xff]
      %v625 = vld [vmem:[%s160 + $0xe18] sm:$0xff]
      %v626 = vld [vmem:[%s160 + $0xe20] sm:$0xff]
      %v627 = vld [vmem:[%s160 + $0xe28] sm:$0xff]
      %v628 = vld [vmem:[%s160 + $0xe30] sm:$0xff]
      %v629 = vld [vmem:[%s160 + $0xe38] sm:$0xff]
      %v630 = vld [vmem:[%s160 + $0xe40] sm:$0xff]
      %v631 = vld [vmem:[%s160 + $0xe48] sm:$0xff]
      %v632 = vld [vmem:[%s160 + $0xe50] sm:$0xff]
      %v633 = vld [vmem:[%s160 + $0xe58] sm:$0xff]
      %v634 = vld [vmem:[%s160 + $0xe60] sm:$0xff]
      %v635 = vld [vmem:[%s160 + $0xe68] sm:$0xff]
      %v636 = vld [vmem:[%s160 + $0xe70] sm:$0xff]
      %v637 = vld [vmem:[%s160 + $0xe78] sm:$0xff]
      %v638 = vld [vmem:[%s160 + $0xe80] sm:$0xff]
      %v639 = vld [vmem:[%s160 + $0xe88] sm:$0xff]
      %v640 = vld [vmem:[%s160 + $0xe90] sm:$0xff]
      %v641 = vld [vmem:[%s160 + $0xe98] sm:$0xff]
      %v642 = vld [vmem:[%s160 + $0xea0] sm:$0xff]
      %v643 = vld [vmem:[%s160 + $0xea8] sm:$0xff]
      %v644 = vld [vmem:[%s160 + $0xeb0] sm:$0xff]
      %v645 = vld [vmem:[%s160 + $0xeb8] sm:$0xff]
      %v646 = vld [vmem:[%s160 + $0xec0] sm:$0xff]
      %v647 = vld [vmem:[%s160 + $0xec8] sm:$0xff]
      %v648 = vld [vmem:[%s160 + $0xed0] sm:$0xff]
      %v649 = vld [vmem:[%s160 + $0xed8] sm:$0xff]
      %v650 = vld [vmem:[%s160 + $0xee0] sm:$0xff]
      %v651 = vld [vmem:[%s160 + $0xee8] sm:$0xff]
      %v652 = vld [vmem:[%s160 + $0xef0] sm:$0xff]
      %v653 = vld [vmem:[%s160 + $0xef8] sm:$0xff]
      %v654 = vld [vmem:[%s160 + $0xf00] sm:$0xff]
      %v655 = vld [vmem:[%s160 + $0xf08] sm:$0xff]
      %v656 = vld [vmem:[%s160 + $0xf10] sm:$0xff]
      %v657 = vld [vmem:[%s160 + $0xf18] sm:$0xff]
      %v658 = vld [vmem:[%s160 + $0xf20] sm:$0xff]
      %v659 = vld [vmem:[%s160 + $0xf28] sm:$0xff]
      %v660 = vld [vmem:[%s160 + $0xf30] sm:$0xff]
      %v661 = vld [vmem:[%s160 + $0xf38] sm:$0xff]
      %v662 = vld [vmem:[%s160 + $0xf40] sm:$0xff]
      %v663 = vld [vmem:[%s160 + $0xf48] sm:$0xff]
      %v664 = vld [vmem:[%s160 + $0xf50] sm:$0xff]
      %v665 = vld [vmem:[%s160 + $0xf58] sm:$0xff]
      %v666 = vld [vmem:[%s160 + $0xf60] sm:$0xff]
      %v667 = vld [vmem:[%s160 + $0xf68] sm:$0xff]
      %v668 = vld [vmem:[%s160 + $0xf70] sm:$0xff]
      %v669 = vld [vmem:[%s160 + $0xf78] sm:$0xff]
      %v670 = vld [vmem:[%s160 + $0xf80] sm:$0xff]
      %v671 = vld [vmem:[%s160 + $0xf88] sm:$0xff]
      %v672 = vld [vmem:[%s160 + $0xf90] sm:$0xff]
      %v673 = vld [vmem:[%s160 + $0xf98] sm:$0xff]
      %v674 = vld [vmem:[%s160 + $0xfa0] sm:$0xff]
      %v675 = vld [vmem:[%s160 + $0xfa8] sm:$0xff]
      %v676 = vld [vmem:[%s160 + $0xfb0] sm:$0xff]
      %v677 = vld [vmem:[%s160 + $0xfb8] sm:$0xff]
      %v678 = vld [vmem:[%s160 + $0xfc0] sm:$0xff]
      %v679 = vld [vmem:[%s160 + $0xfc8] sm:$0xff]
      %v680 = vld [vmem:[%s160 + $0xfd0] sm:$0xff]
      %v681 = vld [vmem:[%s160 + $0xfd8] sm:$0xff]
      %v682 = vld [vmem:[%s160 + $0xfe0] sm:$0xff]
      %v683 = vld [vmem:[%s160 + $0xfe8] sm:$0xff]
      %v684 = vld [vmem:[%s160 + $0xff0] sm:$0xff]
      %v685 = vld [vmem:[%s160 + $0xff8] sm:$0xff]
      %v694 = vcombine.high %v166, %v166
      %v696 = vunpack.c.l.s4 1983009808
      %v697 = vunpack.c.0.s8 %v696
      %v698 = vlaneseq
      %v699 = vshrl.u32 %v698, 7
      %v700 = vsub.s32 %v697, %v699
      %v701 = vrot.slane %v166, %v700
      %v703 = vunpack.c.l.s4 1983009808
      %v704 = vunpack.c.0.s8 %v703
      %v705 = vlaneseq
      %v706 = vshrl.u32 %v705, 7
      %v707 = vsub.s32 %v704, %v706
      %v708 = vrot.slane %v694, %v707
      %v709 = vcombine.high %v701, %v701
      %v710 = vcombine.high %v708, %v708
      %v711 = vcombine.high %v167, %v167
      %v713 = vunpack.c.l.s4 1983009808
      %v714 = vunpack.c.0.s8 %v713
      %v715 = vlaneseq
      %v716 = vshrl.u32 %v715, 7
      %v717 = vsub.s32 %v714, %v716
      %v718 = vrot.slane %v167, %v717
      %v720 = vunpack.c.l.s4 1983009808
      %v721 = vunpack.c.0.s8 %v720
      %v722 = vlaneseq
      %v723 = vshrl.u32 %v722, 7
      %v724 = vsub.s32 %v721, %v723
      %v725 = vrot.slane %v711, %v724
      %v726 = vcombine.high %v718, %v718
      %v727 = vcombine.high %v725, %v725
      %v728 = vcombine.high %v168, %v168
      %v730 = vunpack.c.l.s4 1983009808
      %v731 = vunpack.c.0.s8 %v730
      %v732 = vlaneseq
      %v733 = vshrl.u32 %v732, 7
      %v734 = vsub.s32 %v731, %v733
      %v735 = vrot.slane %v168, %v734
      %v737 = vunpack.c.l.s4 1983009808
      %v738 = vunpack.c.0.s8 %v737
      %v739 = vlaneseq
      %v740 = vshrl.u32 %v739, 7
      %v741 = vsub.s32 %v738, %v740
      %v742 = vrot.slane %v728, %v741
      %v743 = vcombine.high %v735, %v735
      %v744 = vcombine.high %v742, %v742
      %v745 = vcombine.high %v169, %v169
      %v747 = vunpack.c.l.s4 1983009808
      %v748 = vunpack.c.0.s8 %v747
      %v749 = vlaneseq
      %v750 = vshrl.u32 %v749, 7
      %v751 = vsub.s32 %v748, %v750
      %v752 = vrot.slane %v169, %v751
      %v754 = vunpack.c.l.s4 1983009808
      %v755 = vunpack.c.0.s8 %v754
      %v756 = vlaneseq
      %v757 = vshrl.u32 %v756, 7
      %v758 = vsub.s32 %v755, %v757
      %v759 = vrot.slane %v745, %v758
      %v760 = vcombine.high %v752, %v752
      %v761 = vcombine.high %v759, %v759
      %v762 = vcombine.high %v170, %v170
      %v764 = vunpack.c.l.s4 1983009808
      %v765 = vunpack.c.0.s8 %v764
      %v766 = vlaneseq
      %v767 = vshrl.u32 %v766, 7
      %v768 = vsub.s32 %v765, %v767
      %v769 = vrot.slane %v170, %v768
      %v771 = vunpack.c.l.s4 1983009808
      %v772 = vunpack.c.0.s8 %v771
      %v773 = vlaneseq
      %v774 = vshrl.u32 %v773, 7
      %v775 = vsub.s32 %v772, %v774
      %v776 = vrot.slane %v762, %v775
      %v777 = vcombine.high %v769, %v769
      %v778 = vcombine.high %v776, %v776
      %v779 = vcombine.high %v171, %v171
      %v781 = vunpack.c.l.s4 1983009808
      %v782 = vunpack.c.0.s8 %v781
      %v783 = vlaneseq
      %v784 = vshrl.u32 %v783, 7
      %v785 = vsub.s32 %v782, %v784
      %v786 = vrot.slane %v171, %v785
      %v788 = vunpack.c.l.s4 1983009808
      %v789 = vunpack.c.0.s8 %v788
      %v790 = vlaneseq
      %v791 = vshrl.u32 %v790, 7
      %v792 = vsub.s32 %v789, %v791
      %v793 = vrot.slane %v779, %v792
      %v794 = vcombine.high %v786, %v786
      %v795 = vcombine.high %v793, %v793
      %v796 = vcombine.high %v172, %v172
      %v798 = vunpack.c.l.s4 1983009808
      %v799 = vunpack.c.0.s8 %v798
      %v800 = vlaneseq
      %v801 = vshrl.u32 %v800, 7
      %v802 = vsub.s32 %v799, %v801
      %v803 = vrot.slane %v172, %v802
      %v805 = vunpack.c.l.s4 1983009808
      %v806 = vunpack.c.0.s8 %v805
      %v807 = vlaneseq
      %v808 = vshrl.u32 %v807, 7
      %v809 = vsub.s32 %v806, %v808
      %v810 = vrot.slane %v796, %v809
      %v811 = vcombine.high %v803, %v803
      %v812 = vcombine.high %v810, %v810
      %v813 = vcombine.high %v173, %v173
      %v815 = vunpack.c.l.s4 1983009808
      %v816 = vunpack.c.0.s8 %v815
      %v817 = vlaneseq
      %v818 = vshrl.u32 %v817, 7
      %v819 = vsub.s32 %v816, %v818
      %v820 = vrot.slane %v173, %v819
      %v822 = vunpack.c.l.s4 1983009808
      %v823 = vunpack.c.0.s8 %v822
      %v824 = vlaneseq
      %v825 = vshrl.u32 %v824, 7
      %v826 = vsub.s32 %v823, %v825
      %v827 = vrot.slane %v813, %v826
      %v828 = vcombine.high %v820, %v820
      %v829 = vcombine.high %v827, %v827
      %862 = vmatprep.subr.mxu0 0.0
      %863 = vmatpush1.msra.mxu0 %v174
      %864 = vmatprep.subr.mxu0 0.0
      %865 = vmatpush1.msra.mxu0 %v175
      %866 = vmatprep.subr.mxu0 0.0
      %867 = vmatpush1.msra.mxu0 %v176
      %868 = vmatprep.subr.mxu0 0.0
      %869 = vmatpush1.msra.mxu0 %v177
      %870 = vmatprep.subr.mxu0 0.0
      %871 = vmatpush1.msra.mxu0 %v178
      %872 = vmatprep.subr.mxu0 0.0
      %873 = vmatpush1.msra.mxu0 %v179
      %874 = vmatprep.subr.mxu0 0.0
      %875 = vmatpush1.msra.mxu0 %v180
      %876 = vmatprep.subr.mxu0 0.0
      %877 = vmatpush1.msra.mxu0 %v181
      %878 = vmatprep.subr.mxu0 0.0
      %879 = vmatpush1.msra.mxu0 %v182
      %880 = vmatprep.subr.mxu0 0.0
      %881 = vmatpush1.msra.mxu0 %v183
      %882 = vmatprep.subr.mxu0 0.0
      %883 = vmatpush1.msra.mxu0 %v184
      %884 = vmatprep.subr.mxu0 0.0
      %885 = vmatpush1.msra.mxu0 %v185
      %886 = vmatprep.subr.mxu0 0.0
      %887 = vmatpush1.msra.mxu0 %v186
      %888 = vmatprep.subr.mxu0 0.0
      %889 = vmatpush1.msra.mxu0 %v187
      %890 = vmatprep.subr.mxu0 0.0
      %891 = vmatpush1.msra.mxu0 %v188
      %892 = vmatprep.subr.mxu0 0.0
      %893 = vmatpush1.msra.mxu0 %v189
      %894 = vmatprep.subr.mxu0 0.0
      %895 = vmatpush1.msra.mxu0 %v190
      %896 = vmatprep.subr.mxu0 0.0
      %897 = vmatpush1.msra.mxu0 %v191
      %898 = vmatprep.subr.mxu0 0.0
      %899 = vmatpush1.msra.mxu0 %v192
      %900 = vmatprep.subr.mxu0 0.0
      %901 = vmatpush1.msra.mxu0 %v193
      %902 = vmatprep.subr.mxu0 0.0
      %903 = vmatpush1.msra.mxu0 %v194
      %904 = vmatprep.subr.mxu0 0.0
      %905 = vmatpush1.msra.mxu0 %v195
      %906 = vmatprep.subr.mxu0 0.0
      %907 = vmatpush1.msra.mxu0 %v196
      %908 = vmatprep.subr.mxu0 0.0
      %909 = vmatpush1.msra.mxu0 %v197
      %910 = vmatprep.subr.mxu0 0.0
      %911 = vmatpush1.msra.mxu0 %v198
      %912 = vmatprep.subr.mxu0 0.0
      %913 = vmatpush1.msra.mxu0 %v199
      %914 = vmatprep.subr.mxu0 0.0
      %915 = vmatpush1.msra.mxu0 %v200
      %916 = vmatprep.subr.mxu0 0.0
      %917 = vmatpush1.msra.mxu0 %v201
      %918 = vmatprep.subr.mxu0 0.0
      %919 = vmatpush1.msra.mxu0 %v202
      %920 = vmatprep.subr.mxu0 0.0
      %921 = vmatpush1.msra.mxu0 %v203
      %922 = vmatprep.subr.mxu0 0.0
      %923 = vmatpush1.msra.mxu0 %v204
      %924 = vmatprep.subr.mxu0 0.0
      %925 = vmatpush1.msra.mxu0 %v205
      %926 = vmatprep.mubr.f32.mxu0 %v709
      %927 = vmatmul.mubr.f32.gmra.mrb[0].mxu0 %v701
      %v928 = vpop.f32.mrb[0].mxu0
      %v929 = vadd.f32 0.0, %v928
      %v930 = vpop.f32.mrb[0].mxu0
      %931 = vdwg.mxu0
      %932 = vmatprep.subr.mxu0 0.0
      %933 = vmatpush1.msra.mxu0 %v206
      %934 = vmatprep.subr.mxu0 0.0
      %935 = vmatpush1.msra.mxu0 %v207
      %936 = vmatprep.subr.mxu0 0.0
      %937 = vmatpush1.msra.mxu0 %v208
      %938 = vmatprep.subr.mxu0 0.0
      %939 = vmatpush1.msra.mxu0 %v209
      %940 = vmatprep.subr.mxu0 0.0
      %941 = vmatpush1.msra.mxu0 %v210
      %942 = vmatprep.subr.mxu0 0.0
      %943 = vmatpush1.msra.mxu0 %v211
      %944 = vmatprep.subr.mxu0 0.0
      %945 = vmatpush1.msra.mxu0 %v212
      %946 = vmatprep.subr.mxu0 0.0
      %947 = vmatpush1.msra.mxu0 %v213
      %948 = vmatprep.subr.mxu0 0.0
      %949 = vmatpush1.msra.mxu0 %v214
      %950 = vmatprep.subr.mxu0 0.0
      %951 = vmatpush1.msra.mxu0 %v215
      %952 = vmatprep.subr.mxu0 0.0
      %953 = vmatpush1.msra.mxu0 %v216
      %954 = vmatprep.subr.mxu0 0.0
      %955 = vmatpush1.msra.mxu0 %v217
      %956 = vmatprep.subr.mxu0 0.0
      %957 = vmatpush1.msra.mxu0 %v218
      %958 = vmatprep.subr.mxu0 0.0
      %959 = vmatpush1.msra.mxu0 %v219
      %960 = vmatprep.subr.mxu0 0.0
      %961 = vmatpush1.msra.mxu0 %v220
      %962 = vmatprep.subr.mxu0 0.0
      %963 = vmatpush1.msra.mxu0 %v221
      %964 = vmatprep.subr.mxu0 0.0
      %965 = vmatpush1.msra.mxu0 %v222
      %966 = vmatprep.subr.mxu0 0.0
      %967 = vmatpush1.msra.mxu0 %v223
      %968 = vmatprep.subr.mxu0 0.0
      %969 = vmatpush1.msra.mxu0 %v224
      %970 = vmatprep.subr.mxu0 0.0
      %971 = vmatpush1.msra.mxu0 %v225
      %972 = vmatprep.subr.mxu0 0.0
      %973 = vmatpush1.msra.mxu0 %v226
      %974 = vmatprep.subr.mxu0 0.0
      %975 = vmatpush1.msra.mxu0 %v227
      %976 = vmatprep.subr.mxu0 0.0
      %977 = vmatpush1.msra.mxu0 %v228
      %978 = vmatprep.subr.mxu0 0.0
      %979 = vmatpush1.msra.mxu0 %v229
      %980 = vmatprep.subr.mxu0 0.0
      %981 = vmatpush1.msra.mxu0 %v230
      %982 = vmatprep.subr.mxu0 0.0
      %983 = vmatpush1.msra.mxu0 %v231
      %984 = vmatprep.subr.mxu0 0.0
      %985 = vmatpush1.msra.mxu0 %v232
      %986 = vmatprep.subr.mxu0 0.0
      %987 = vmatpush1.msra.mxu0 %v233
      %988 = vmatprep.subr.mxu0 0.0
      %989 = vmatpush1.msra.mxu0 %v234
      %990 = vmatprep.subr.mxu0 0.0
      %991 = vmatpush1.msra.mxu0 %v235
      %992 = vmatprep.subr.mxu0 0.0
      %993 = vmatpush1.msra.mxu0 %v236
      %994 = vmatprep.subr.mxu0 0.0
      %995 = vmatpush1.msra.mxu0 %v237
      %996 = vmatprep.mubr.f32.mxu0 %v710
      %997 = vmatmul.mubr.f32.gmra.mrb[0].mxu0 %v708
      %v998 = vpop.f32.mrb[0].mxu0
      %v999 = vadd.f32 %v929, %v998
      %v1000 = vpop.f32.mrb[0].mxu0
      %1001 = vdwg.mxu0
      %1002 = vmatprep.subr.mxu0 0.0
      %1003 = vmatpush1.msra.mxu0 %v238
      %1004 = vmatprep.subr.mxu0 0.0
      %1005 = vmatpush1.msra.mxu0 %v239
      %1006 = vmatprep.subr.mxu0 0.0
      %1007 = vmatpush1.msra.mxu0 %v240
      %1008 = vmatprep.subr.mxu0 0.0
      %1009 = vmatpush1.msra.mxu0 %v241
      %1010 = vmatprep.subr.mxu0 0.0
      %1011 = vmatpush1.msra.mxu0 %v242
      %1012 = vmatprep.subr.mxu0 0.0
      %1013 = vmatpush1.msra.mxu0 %v243
      %1014 = vmatprep.subr.mxu0 0.0
      %1015 = vmatpush1.msra.mxu0 %v244
      %1016 = vmatprep.subr.mxu0 0.0
      %1017 = vmatpush1.msra.mxu0 %v245
      %1018 = vmatprep.subr.mxu0 0.0
      %1019 = vmatpush1.msra.mxu0 %v246
      %1020 = vmatprep.subr.mxu0 0.0
      %1021 = vmatpush1.msra.mxu0 %v247
      %1022 = vmatprep.subr.mxu0 0.0
      %1023 = vmatpush1.msra.mxu0 %v248
      %1024 = vmatprep.subr.mxu0 0.0
      %1025 = vmatpush1.msra.mxu0 %v249
      %1026 = vmatprep.subr.mxu0 0.0
      %1027 = vmatpush1.msra.mxu0 %v250
      %1028 = vmatprep.subr.mxu0 0.0
      %1029 = vmatpush1.msra.mxu0 %v251
      %1030 = vmatprep.subr.mxu0 0.0
      %1031 = vmatpush1.msra.mxu0 %v252
      %1032 = vmatprep.subr.mxu0 0.0
      %1033 = vmatpush1.msra.mxu0 %v253
      %1034 = vmatprep.subr.mxu0 0.0
      %1035 = vmatpush1.msra.mxu0 %v254
      %1036 = vmatprep.subr.mxu0 0.0
      %1037 = vmatpush1.msra.mxu0 %v255
      %1038 = vmatprep.subr.mxu0 0.0
      %1039 = vmatpush1.msra.mxu0 %v256
      %1040 = vmatprep.subr.mxu0 0.0
      %1041 = vmatpush1.msra.mxu0 %v257
      %1042 = vmatprep.subr.mxu0 0.0
      %1043 = vmatpush1.msra.mxu0 %v258
      %1044 = vmatprep.subr.mxu0 0.0
      %1045 = vmatpush1.msra.mxu0 %v259
      %1046 = vmatprep.subr.mxu0 0.0
      %1047 = vmatpush1.msra.mxu0 %v260
      %1048 = vmatprep.subr.mxu0 0.0
      %1049 = vmatpush1.msra.mxu0 %v261
      %1050 = vmatprep.subr.mxu0 0.0
      %1051 = vmatpush1.msra.mxu0 %v262
      %1052 = vmatprep.subr.mxu0 0.0
      %1053 = vmatpush1.msra.mxu0 %v263
      %1054 = vmatprep.subr.mxu0 0.0
      %1055 = vmatpush1.msra.mxu0 %v264
      %1056 = vmatprep.subr.mxu0 0.0
      %1057 = vmatpush1.msra.mxu0 %v265
      %1058 = vmatprep.subr.mxu0 0.0
      %1059 = vmatpush1.msra.mxu0 %v266
      %1060 = vmatprep.subr.mxu0 0.0
      %1061 = vmatpush1.msra.mxu0 %v267
      %1062 = vmatprep.subr.mxu0 0.0
      %1063 = vmatpush1.msra.mxu0 %v268
      %1064 = vmatprep.subr.mxu0 0.0
      %1065 = vmatpush1.msra.mxu0 %v269
      %1066 = vmatprep.mubr.f32.mxu0 %v726
      %1067 = vmatmul.mubr.f32.gmra.mrb[0].mxu0 %v718
      %v1068 = vpop.f32.mrb[0].mxu0
      %v1069 = vadd.f32 %v999, %v1068
      %v1070 = vpop.f32.mrb[0].mxu0
      %1071 = vdwg.mxu0
      %1072 = vmatprep.subr.mxu0 0.0
      %1073 = vmatpush1.msra.mxu0 %v270
      %1074 = vmatprep.subr.mxu0 0.0
      %1075 = vmatpush1.msra.mxu0 %v271
      %1076 = vmatprep.subr.mxu0 0.0
      %1077 = vmatpush1.msra.mxu0 %v272
      %1078 = vmatprep.subr.mxu0 0.0
      %1079 = vmatpush1.msra.mxu0 %v273
      %1080 = vmatprep.subr.mxu0 0.0
      %1081 = vmatpush1.msra.mxu0 %v274
      %1082 = vmatprep.subr.mxu0 0.0
      %1083 = vmatpush1.msra.mxu0 %v275
      %1084 = vmatprep.subr.mxu0 0.0
      %1085 = vmatpush1.msra.mxu0 %v276
      %1086 = vmatprep.subr.mxu0 0.0
      %1087 = vmatpush1.msra.mxu0 %v277
      %1088 = vmatprep.subr.mxu0 0.0
      %1089 = vmatpush1.msra.mxu0 %v278
      %1090 = vmatprep.subr.mxu0 0.0
      %1091 = vmatpush1.msra.mxu0 %v279
      %1092 = vmatprep.subr.mxu0 0.0
      %1093 = vmatpush1.msra.mxu0 %v280
      %1094 = vmatprep.subr.mxu0 0.0
      %1095 = vmatpush1.msra.mxu0 %v281
      %1096 = vmatprep.subr.mxu0 0.0
      %1097 = vmatpush1.msra.mxu0 %v282
      %1098 = vmatprep.subr.mxu0 0.0
      %1099 = vmatpush1.msra.mxu0 %v283
      %1100 = vmatprep.subr.mxu0 0.0
      %1101 = vmatpush1.msra.mxu0 %v284
      %1102 = vmatprep.subr.mxu0 0.0
      %1103 = vmatpush1.msra.mxu0 %v285
      %1104 = vmatprep.subr.mxu0 0.0
      %1105 = vmatpush1.msra.mxu0 %v286
      %1106 = vmatprep.subr.mxu0 0.0
      %1107 = vmatpush1.msra.mxu0 %v287
      %1108 = vmatprep.subr.mxu0 0.0
      %1109 = vmatpush1.msra.mxu0 %v288
      %1110 = vmatprep.subr.mxu0 0.0
      %1111 = vmatpush1.msra.mxu0 %v289
      %1112 = vmatprep.subr.mxu0 0.0
      %1113 = vmatpush1.msra.mxu0 %v290
      %1114 = vmatprep.subr.mxu0 0.0
      %1115 = vmatpush1.msra.mxu0 %v291
      %1116 = vmatprep.subr.mxu0 0.0
      %1117 = vmatpush1.msra.mxu0 %v292
      %1118 = vmatprep.subr.mxu0 0.0
      %1119 = vmatpush1.msra.mxu0 %v293
      %1120 = vmatprep.subr.mxu0 0.0
      %1121 = vmatpush1.msra.mxu0 %v294
      %1122 = vmatprep.subr.mxu0 0.0
      %1123 = vmatpush1.msra.mxu0 %v295
      %1124 = vmatprep.subr.mxu0 0.0
      %1125 = vmatpush1.msra.mxu0 %v296
      %1126 = vmatprep.subr.mxu0 0.0
      %1127 = vmatpush1.msra.mxu0 %v297
      %1128 = vmatprep.subr.mxu0 0.0
      %1129 = vmatpush1.msra.mxu0 %v298
      %1130 = vmatprep.subr.mxu0 0.0
      %1131 = vmatpush1.msra.mxu0 %v299
      %1132 = vmatprep.subr.mxu0 0.0
      %1133 = vmatpush1.msra.mxu0 %v300
      %1134 = vmatprep.subr.mxu0 0.0
      %1135 = vmatpush1.msra.mxu0 %v301
      %1136 = vmatprep.mubr.f32.mxu0 %v727
      %1137 = vmatmul.mubr.f32.gmra.mrb[0].mxu0 %v725
      %v1138 = vpop.f32.mrb[0].mxu0
      %v1139 = vadd.f32 %v1069, %v1138
      %v1140 = vpop.f32.mrb[0].mxu0
      %1141 = vdwg.mxu0
      %1142 = vmatprep.subr.mxu0 0.0
      %1143 = vmatpush1.msra.mxu0 %v302
      %1144 = vmatprep.subr.mxu0 0.0
      %1145 = vmatpush1.msra.mxu0 %v303
      %1146 = vmatprep.subr.mxu0 0.0
      %1147 = vmatpush1.msra.mxu0 %v304
      %1148 = vmatprep.subr.mxu0 0.0
      %1149 = vmatpush1.msra.mxu0 %v305
      %1150 = vmatprep.subr.mxu0 0.0
      %1151 = vmatpush1.msra.mxu0 %v306
      %1152 = vmatprep.subr.mxu0 0.0
      %1153 = vmatpush1.msra.mxu0 %v307
      %1154 = vmatprep.subr.mxu0 0.0
      %1155 = vmatpush1.msra.mxu0 %v308
      %1156 = vmatprep.subr.mxu0 0.0
      %1157 = vmatpush1.msra.mxu0 %v309
      %1158 = vmatprep.subr.mxu0 0.0
      %1159 = vmatpush1.msra.mxu0 %v310
      %1160 = vmatprep.subr.mxu0 0.0
      %1161 = vmatpush1.msra.mxu0 %v311
      %1162 = vmatprep.subr.mxu0 0.0
      %1163 = vmatpush1.msra.mxu0 %v312
      %1164 = vmatprep.subr.mxu0 0.0
      %1165 = vmatpush1.msra.mxu0 %v313
      %1166 = vmatprep.subr.mxu0 0.0
      %1167 = vmatpush1.msra.mxu0 %v314
      %1168 = vmatprep.subr.mxu0 0.0
      %1169 = vmatpush1.msra.mxu0 %v315
      %1170 = vmatprep.subr.mxu0 0.0
      %1171 = vmatpush1.msra.mxu0 %v316
      %1172 = vmatprep.subr.mxu0 0.0
      %1173 = vmatpush1.msra.mxu0 %v317
      %1174 = vmatprep.subr.mxu0 0.0
      %1175 = vmatpush1.msra.mxu0 %v318
      %1176 = vmatprep.subr.mxu0 0.0
      %1177 = vmatpush1.msra.mxu0 %v319
      %1178 = vmatprep.subr.mxu0 0.0
      %1179 = vmatpush1.msra.mxu0 %v320
      %1180 = vmatprep.subr.mxu0 0.0
      %1181 = vmatpush1.msra.mxu0 %v321
      %1182 = vmatprep.subr.mxu0 0.0
      %1183 = vmatpush1.msra.mxu0 %v322
      %1184 = vmatprep.subr.mxu0 0.0
      %1185 = vmatpush1.msra.mxu0 %v323
      %1186 = vmatprep.subr.mxu0 0.0
      %1187 = vmatpush1.msra.mxu0 %v324
      %1188 = vmatprep.subr.mxu0 0.0
      %1189 = vmatpush1.msra.mxu0 %v325
      %1190 = vmatprep.subr.mxu0 0.0
      %1191 = vmatpush1.msra.mxu0 %v326
      %1192 = vmatprep.subr.mxu0 0.0
      %1193 = vmatpush1.msra.mxu0 %v327
      %1194 = vmatprep.subr.mxu0 0.0
      %1195 = vmatpush1.msra.mxu0 %v328
      %1196 = vmatprep.subr.mxu0 0.0
      %1197 = vmatpush1.msra.mxu0 %v329
      %1198 = vmatprep.subr.mxu0 0.0
      %1199 = vmatpush1.msra.mxu0 %v330
      %1200 = vmatprep.subr.mxu0 0.0
      %1201 = vmatpush1.msra.mxu0 %v331
      %1202 = vmatprep.subr.mxu0 0.0
      %1203 = vmatpush1.msra.mxu0 %v332
      %1204 = vmatprep.subr.mxu0 0.0
      %1205 = vmatpush1.msra.mxu0 %v333
      %1206 = vmatprep.mubr.f32.mxu0 %v743
      %1207 = vmatmul.mubr.f32.gmra.mrb[0].mxu0 %v735
      %v1208 = vpop.f32.mrb[0].mxu0
      %v1209 = vadd.f32 %v1139, %v1208
      %v1210 = vpop.f32.mrb[0].mxu0
      %1211 = vdwg.mxu0
      %1212 = vmatprep.subr.mxu0 0.0
      %1213 = vmatpush1.msra.mxu0 %v334
      %1214 = vmatprep.subr.mxu0 0.0
      %1215 = vmatpush1.msra.mxu0 %v335
      %1216 = vmatprep.subr.mxu0 0.0
      %1217 = vmatpush1.msra.mxu0 %v336
      %1218 = vmatprep.subr.mxu0 0.0
      %1219 = vmatpush1.msra.mxu0 %v337
      %1220 = vmatprep.subr.mxu0 0.0
      %1221 = vmatpush1.msra.mxu0 %v338
      %1222 = vmatprep.subr.mxu0 0.0
      %1223 = vmatpush1.msra.mxu0 %v339
      %1224 = vmatprep.subr.mxu0 0.0
      %1225 = vmatpush1.msra.mxu0 %v340
      %1226 = vmatprep.subr.mxu0 0.0
      %1227 = vmatpush1.msra.mxu0 %v341
      %1228 = vmatprep.subr.mxu0 0.0
      %1229 = vmatpush1.msra.mxu0 %v342
      %1230 = vmatprep.subr.mxu0 0.0
      %1231 = vmatpush1.msra.mxu0 %v343
      %1232 = vmatprep.subr.mxu0 0.0
      %1233 = vmatpush1.msra.mxu0 %v344
      %1234 = vmatprep.subr.mxu0 0.0
      %1235 = vmatpush1.msra.mxu0 %v345
      %1236 = vmatprep.subr.mxu0 0.0
      %1237 = vmatpush1.msra.mxu0 %v346
      %1238 = vmatprep.subr.mxu0 0.0
      %1239 = vmatpush1.msra.mxu0 %v347
      %1240 = vmatprep.subr.mxu0 0.0
      %1241 = vmatpush1.msra.mxu0 %v348
      %1242 = vmatprep.subr.mxu0 0.0
      %1243 = vmatpush1.msra.mxu0 %v349
      %1244 = vmatprep.subr.mxu0 0.0
      %1245 = vmatpush1.msra.mxu0 %v350
      %1246 = vmatprep.subr.mxu0 0.0
      %1247 = vmatpush1.msra.mxu0 %v351
      %1248 = vmatprep.subr.mxu0 0.0
      %1249 = vmatpush1.msra.mxu0 %v352
      %1250 = vmatprep.subr.mxu0 0.0
      %1251 = vmatpush1.msra.mxu0 %v353
      %1252 = vmatprep.subr.mxu0 0.0
      %1253 = vmatpush1.msra.mxu0 %v354
      %1254 = vmatprep.subr.mxu0 0.0
      %1255 = vmatpush1.msra.mxu0 %v355
      %1256 = vmatprep.subr.mxu0 0.0
      %1257 = vmatpush1.msra.mxu0 %v356
      %1258 = vmatprep.subr.mxu0 0.0
      %1259 = vmatpush1.msra.mxu0 %v357
      %1260 = vmatprep.subr.mxu0 0.0
      %1261 = vmatpush1.msra.mxu0 %v358
      %1262 = vmatprep.subr.mxu0 0.0
      %1263 = vmatpush1.msra.mxu0 %v359
      %1264 = vmatprep.subr.mxu0 0.0
      %1265 = vmatpush1.msra.mxu0 %v360
      %1266 = vmatprep.subr.mxu0 0.0
      %1267 = vmatpush1.msra.mxu0 %v361
      %1268 = vmatprep.subr.mxu0 0.0
      %1269 = vmatpush1.msra.mxu0 %v362
      %1270 = vmatprep.subr.mxu0 0.0
      %1271 = vmatpush1.msra.mxu0 %v363
      %1272 = vmatprep.subr.mxu0 0.0
      %1273 = vmatpush1.msra.mxu0 %v364
      %1274 = vmatprep.subr.mxu0 0.0
      %1275 = vmatpush1.msra.mxu0 %v365
      %1276 = vmatprep.mubr.f32.mxu0 %v744
      %1277 = vmatmul.mubr.f32.gmra.mrb[0].mxu0 %v742
      %v1278 = vpop.f32.mrb[0].mxu0
      %v1279 = vadd.f32 %v1209, %v1278
      %v1280 = vpop.f32.mrb[0].mxu0
      %1281 = vdwg.mxu0
      %1282 = vmatprep.subr.mxu0 0.0
      %1283 = vmatpush1.msra.mxu0 %v366
      %1284 = vmatprep.subr.mxu0 0.0
      %1285 = vmatpush1.msra.mxu0 %v367
      %1286 = vmatprep.subr.mxu0 0.0
      %1287 = vmatpush1.msra.mxu0 %v368
      %1288 = vmatprep.subr.mxu0 0.0
      %1289 = vmatpush1.msra.mxu0 %v369
      %1290 = vmatprep.subr.mxu0 0.0
      %1291 = vmatpush1.msra.mxu0 %v370
      %1292 = vmatprep.subr.mxu0 0.0
      %1293 = vmatpush1.msra.mxu0 %v371
      %1294 = vmatprep.subr.mxu0 0.0
      %1295 = vmatpush1.msra.mxu0 %v372
      %1296 = vmatprep.subr.mxu0 0.0
      %1297 = vmatpush1.msra.mxu0 %v373
      %1298 = vmatprep.subr.mxu0 0.0
      %1299 = vmatpush1.msra.mxu0 %v374
      %1300 = vmatprep.subr.mxu0 0.0
      %1301 = vmatpush1.msra.mxu0 %v375
      %1302 = vmatprep.subr.mxu0 0.0
      %1303 = vmatpush1.msra.mxu0 %v376
      %1304 = vmatprep.subr.mxu0 0.0
      %1305 = vmatpush1.msra.mxu0 %v377
      %1306 = vmatprep.subr.mxu0 0.0
      %1307 = vmatpush1.msra.mxu0 %v378
      %1308 = vmatprep.subr.mxu0 0.0
      %1309 = vmatpush1.msra.mxu0 %v379
      %1310 = vmatprep.subr.mxu0 0.0
      %1311 = vmatpush1.msra.mxu0 %v380
      %1312 = vmatprep.subr.mxu0 0.0
      %1313 = vmatpush1.msra.mxu0 %v381
      %1314 = vmatprep.subr.mxu0 0.0
      %1315 = vmatpush1.msra.mxu0 %v382
      %1316 = vmatprep.subr.mxu0 0.0
      %1317 = vmatpush1.msra.mxu0 %v383
      %1318 = vmatprep.subr.mxu0 0.0
      %1319 = vmatpush1.msra.mxu0 %v384
      %1320 = vmatprep.subr.mxu0 0.0
      %1321 = vmatpush1.msra.mxu0 %v385
      %1322 = vmatprep.subr.mxu0 0.0
      %1323 = vmatpush1.msra.mxu0 %v386
      %1324 = vmatprep.subr.mxu0 0.0
      %1325 = vmatpush1.msra.mxu0 %v387
      %1326 = vmatprep.subr.mxu0 0.0
      %1327 = vmatpush1.msra.mxu0 %v388
      %1328 = vmatprep.subr.mxu0 0.0
      %1329 = vmatpush1.msra.mxu0 %v389
      %1330 = vmatprep.subr.mxu0 0.0
      %1331 = vmatpush1.msra.mxu0 %v390
      %1332 = vmatprep.subr.mxu0 0.0
      %1333 = vmatpush1.msra.mxu0 %v391
      %1334 = vmatprep.subr.mxu0 0.0
      %1335 = vmatpush1.msra.mxu0 %v392
      %1336 = vmatprep.subr.mxu0 0.0
      %1337 = vmatpush1.msra.mxu0 %v393
      %1338 = vmatprep.subr.mxu0 0.0
      %1339 = vmatpush1.msra.mxu0 %v394
      %1340 = vmatprep.subr.mxu0 0.0
      %1341 = vmatpush1.msra.mxu0 %v395
      %1342 = vmatprep.subr.mxu0 0.0
      %1343 = vmatpush1.msra.mxu0 %v396
      %1344 = vmatprep.subr.mxu0 0.0
      %1345 = vmatpush1.msra.mxu0 %v397
      %1346 = vmatprep.mubr.f32.mxu0 %v760
      %1347 = vmatmul.mubr.f32.gmra.mrb[0].mxu0 %v752
      %v1348 = vpop.f32.mrb[0].mxu0
      %v1349 = vadd.f32 %v1279, %v1348
      %v1350 = vpop.f32.mrb[0].mxu0
      %1351 = vdwg.mxu0
      %1352 = vmatprep.subr.mxu0 0.0
      %1353 = vmatpush1.msra.mxu0 %v398
      %1354 = vmatprep.subr.mxu0 0.0
      %1355 = vmatpush1.msra.mxu0 %v399
      %1356 = vmatprep.subr.mxu0 0.0
      %1357 = vmatpush1.msra.mxu0 %v400
      %1358 = vmatprep.subr.mxu0 0.0
      %1359 = vmatpush1.msra.mxu0 %v401
      %1360 = vmatprep.subr.mxu0 0.0
      %1361 = vmatpush1.msra.mxu0 %v402
      %1362 = vmatprep.subr.mxu0 0.0
      %1363 = vmatpush1.msra.mxu0 %v403
      %1364 = vmatprep.subr.mxu0 0.0
      %1365 = vmatpush1.msra.mxu0 %v404
      %1366 = vmatprep.subr.mxu0 0.0
      %1367 = vmatpush1.msra.mxu0 %v405
      %1368 = vmatprep.subr.mxu0 0.0
      %1369 = vmatpush1.msra.mxu0 %v406
      %1370 = vmatprep.subr.mxu0 0.0
      %1371 = vmatpush1.msra.mxu0 %v407
      %1372 = vmatprep.subr.mxu0 0.0
      %1373 = vmatpush1.msra.mxu0 %v408
      %1374 = vmatprep.subr.mxu0 0.0
      %1375 = vmatpush1.msra.mxu0 %v409
      %1376 = vmatprep.subr.mxu0 0.0
      %1377 = vmatpush1.msra.mxu0 %v410
      %1378 = vmatprep.subr.mxu0 0.0
      %1379 = vmatpush1.msra.mxu0 %v411
      %1380 = vmatprep.subr.mxu0 0.0
      %1381 = vmatpush1.msra.mxu0 %v412
      %1382 = vmatprep.subr.mxu0 0.0
      %1383 = vmatpush1.msra.mxu0 %v413
      %1384 = vmatprep.subr.mxu0 0.0
      %1385 = vmatpush1.msra.mxu0 %v414
      %1386 = vmatprep.subr.mxu0 0.0
      %1387 = vmatpush1.msra.mxu0 %v415
      %1388 = vmatprep.subr.mxu0 0.0
      %1389 = vmatpush1.msra.mxu0 %v416
      %1390 = vmatprep.subr.mxu0 0.0
      %1391 = vmatpush1.msra.mxu0 %v417
      %1392 = vmatprep.subr.mxu0 0.0
      %1393 = vmatpush1.msra.mxu0 %v418
      %1394 = vmatprep.subr.mxu0 0.0
      %1395 = vmatpush1.msra.mxu0 %v419
      %1396 = vmatprep.subr.mxu0 0.0
      %1397 = vmatpush1.msra.mxu0 %v420
      %1398 = vmatprep.subr.mxu0 0.0
      %1399 = vmatpush1.msra.mxu0 %v421
      %1400 = vmatprep.subr.mxu0 0.0
      %1401 = vmatpush1.msra.mxu0 %v422
      %1402 = vmatprep.subr.mxu0 0.0
      %1403 = vmatpush1.msra.mxu0 %v423
      %1404 = vmatprep.subr.mxu0 0.0
      %1405 = vmatpush1.msra.mxu0 %v424
      %1406 = vmatprep.subr.mxu0 0.0
      %1407 = vmatpush1.msra.mxu0 %v425
      %1408 = vmatprep.subr.mxu0 0.0
      %1409 = vmatpush1.msra.mxu0 %v426
      %1410 = vmatprep.subr.mxu0 0.0
      %1411 = vmatpush1.msra.mxu0 %v427
      %1412 = vmatprep.subr.mxu0 0.0
      %1413 = vmatpush1.msra.mxu0 %v428
      %1414 = vmatprep.subr.mxu0 0.0
      %1415 = vmatpush1.msra.mxu0 %v429
      %1416 = vmatprep.mubr.f32.mxu0 %v761
      %1417 = vmatmul.mubr.f32.gmra.mrb[0].mxu0 %v759
      %v1418 = vpop.f32.mrb[0].mxu0
      %v1419 = vadd.f32 %v1349, %v1418
      %v1420 = vpop.f32.mrb[0].mxu0
      %1421 = vdwg.mxu0
      %1422 = vmatprep.subr.mxu0 0.0
      %1423 = vmatpush1.msra.mxu0 %v430
      %1424 = vmatprep.subr.mxu0 0.0
      %1425 = vmatpush1.msra.mxu0 %v431
      %1426 = vmatprep.subr.mxu0 0.0
      %1427 = vmatpush1.msra.mxu0 %v432
      %1428 = vmatprep.subr.mxu0 0.0
      %1429 = vmatpush1.msra.mxu0 %v433
      %1430 = vmatprep.subr.mxu0 0.0
      %1431 = vmatpush1.msra.mxu0 %v434
      %1432 = vmatprep.subr.mxu0 0.0
      %1433 = vmatpush1.msra.mxu0 %v435
      %1434 = vmatprep.subr.mxu0 0.0
      %1435 = vmatpush1.msra.mxu0 %v436
      %1436 = vmatprep.subr.mxu0 0.0
      %1437 = vmatpush1.msra.mxu0 %v437
      %1438 = vmatprep.subr.mxu0 0.0
      %1439 = vmatpush1.msra.mxu0 %v438
      %1440 = vmatprep.subr.mxu0 0.0
      %1441 = vmatpush1.msra.mxu0 %v439
      %1442 = vmatprep.subr.mxu0 0.0
      %1443 = vmatpush1.msra.mxu0 %v440
      %1444 = vmatprep.subr.mxu0 0.0
      %1445 = vmatpush1.msra.mxu0 %v441
      %1446 = vmatprep.subr.mxu0 0.0
      %1447 = vmatpush1.msra.mxu0 %v442
      %1448 = vmatprep.subr.mxu0 0.0
      %1449 = vmatpush1.msra.mxu0 %v443
      %1450 = vmatprep.subr.mxu0 0.0
      %1451 = vmatpush1.msra.mxu0 %v444
      %1452 = vmatprep.subr.mxu0 0.0
      %1453 = vmatpush1.msra.mxu0 %v445
      %1454 = vmatprep.subr.mxu0 0.0
      %1455 = vmatpush1.msra.mxu0 %v446
      %1456 = vmatprep.subr.mxu0 0.0
      %1457 = vmatpush1.msra.mxu0 %v447
      %1458 = vmatprep.subr.mxu0 0.0
      %1459 = vmatpush1.msra.mxu0 %v448
      %1460 = vmatprep.subr.mxu0 0.0
      %1461 = vmatpush1.msra.mxu0 %v449
      %1462 = vmatprep.subr.mxu0 0.0
      %1463 = vmatpush1.msra.mxu0 %v450
      %1464 = vmatprep.subr.mxu0 0.0
      %1465 = vmatpush1.msra.mxu0 %v451
      %1466 = vmatprep.subr.mxu0 0.0
      %1467 = vmatpush1.msra.mxu0 %v452
      %1468 = vmatprep.subr.mxu0 0.0
      %1469 = vmatpush1.msra.mxu0 %v453
      %1470 = vmatprep.subr.mxu0 0.0
      %1471 = vmatpush1.msra.mxu0 %v454
      %1472 = vmatprep.subr.mxu0 0.0
      %1473 = vmatpush1.msra.mxu0 %v455
      %1474 = vmatprep.subr.mxu0 0.0
      %1475 = vmatpush1.msra.mxu0 %v456
      %1476 = vmatprep.subr.mxu0 0.0
      %1477 = vmatpush1.msra.mxu0 %v457
      %1478 = vmatprep.subr.mxu0 0.0
      %1479 = vmatpush1.msra.mxu0 %v458
      %1480 = vmatprep.subr.mxu0 0.0
      %1481 = vmatpush1.msra.mxu0 %v459
      %1482 = vmatprep.subr.mxu0 0.0
      %1483 = vmatpush1.msra.mxu0 %v460
      %1484 = vmatprep.subr.mxu0 0.0
      %1485 = vmatpush1.msra.mxu0 %v461
      %1486 = vmatprep.mubr.f32.mxu0 %v777
      %1487 = vmatmul.mubr.f32.gmra.mrb[0].mxu0 %v769
      %v1488 = vpop.f32.mrb[0].mxu0
      %v1489 = vadd.f32 %v1419, %v1488
      %v1490 = vpop.f32.mrb[0].mxu0
      %1491 = vdwg.mxu0
      %1492 = vmatprep.subr.mxu0 0.0
      %1493 = vmatpush1.msra.mxu0 %v462
      %1494 = vmatprep.subr.mxu0 0.0
      %1495 = vmatpush1.msra.mxu0 %v463
      %1496 = vmatprep.subr.mxu0 0.0
      %1497 = vmatpush1.msra.mxu0 %v464
      %1498 = vmatprep.subr.mxu0 0.0
      %1499 = vmatpush1.msra.mxu0 %v465
      %1500 = vmatprep.subr.mxu0 0.0
      %1501 = vmatpush1.msra.mxu0 %v466
      %1502 = vmatprep.subr.mxu0 0.0
      %1503 = vmatpush1.msra.mxu0 %v467
      %1504 = vmatprep.subr.mxu0 0.0
      %1505 = vmatpush1.msra.mxu0 %v468
      %1506 = vmatprep.subr.mxu0 0.0
      %1507 = vmatpush1.msra.mxu0 %v469
      %1508 = vmatprep.subr.mxu0 0.0
      %1509 = vmatpush1.msra.mxu0 %v470
      %1510 = vmatprep.subr.mxu0 0.0
      %1511 = vmatpush1.msra.mxu0 %v471
      %1512 = vmatprep.subr.mxu0 0.0
      %1513 = vmatpush1.msra.mxu0 %v472
      %1514 = vmatprep.subr.mxu0 0.0
      %1515 = vmatpush1.msra.mxu0 %v473
      %1516 = vmatprep.subr.mxu0 0.0
      %1517 = vmatpush1.msra.mxu0 %v474
      %1518 = vmatprep.subr.mxu0 0.0
      %1519 = vmatpush1.msra.mxu0 %v475
      %1520 = vmatprep.subr.mxu0 0.0
      %1521 = vmatpush1.msra.mxu0 %v476
      %1522 = vmatprep.subr.mxu0 0.0
      %1523 = vmatpush1.msra.mxu0 %v477
      %1524 = vmatprep.subr.mxu0 0.0
      %1525 = vmatpush1.msra.mxu0 %v478
      %1526 = vmatprep.subr.mxu0 0.0
      %1527 = vmatpush1.msra.mxu0 %v479
      %1528 = vmatprep.subr.mxu0 0.0
      %1529 = vmatpush1.msra.mxu0 %v480
      %1530 = vmatprep.subr.mxu0 0.0
      %1531 = vmatpush1.msra.mxu0 %v481
      %1532 = vmatprep.subr.mxu0 0.0
      %1533 = vmatpush1.msra.mxu0 %v482
      %1534 = vmatprep.subr.mxu0 0.0
      %1535 = vmatpush1.msra.mxu0 %v483
      %1536 = vmatprep.subr.mxu0 0.0
      %1537 = vmatpush1.msra.mxu0 %v484
      %1538 = vmatprep.subr.mxu0 0.0
      %1539 = vmatpush1.msra.mxu0 %v485
      %1540 = vmatprep.subr.mxu0 0.0
      %1541 = vmatpush1.msra.mxu0 %v486
      %1542 = vmatprep.subr.mxu0 0.0
      %1543 = vmatpush1.msra.mxu0 %v487
      %1544 = vmatprep.subr.mxu0 0.0
      %1545 = vmatpush1.msra.mxu0 %v488
      %1546 = vmatprep.subr.mxu0 0.0
      %1547 = vmatpush1.msra.mxu0 %v489
      %1548 = vmatprep.subr.mxu0 0.0
      %1549 = vmatpush1.msra.mxu0 %v490
      %1550 = vmatprep.subr.mxu0 0.0
      %1551 = vmatpush1.msra.mxu0 %v491
      %1552 = vmatprep.subr.mxu0 0.0
      %1553 = vmatpush1.msra.mxu0 %v492
      %1554 = vmatprep.subr.mxu0 0.0
      %1555 = vmatpush1.msra.mxu0 %v493
      %1556 = vmatprep.mubr.f32.mxu0 %v778
      %1557 = vmatmul.mubr.f32.gmra.mrb[0].mxu0 %v776
      %v1558 = vpop.f32.mrb[0].mxu0
      %v1559 = vadd.f32 %v1489, %v1558
      %v1560 = vpop.f32.mrb[0].mxu0
      %1561 = vdwg.mxu0
      %1562 = vmatprep.subr.mxu0 0.0
      %1563 = vmatpush1.msra.mxu0 %v494
      %1564 = vmatprep.subr.mxu0 0.0
      %1565 = vmatpush1.msra.mxu0 %v495
      %1566 = vmatprep.subr.mxu0 0.0
      %1567 = vmatpush1.msra.mxu0 %v496
      %1568 = vmatprep.subr.mxu0 0.0
      %1569 = vmatpush1.msra.mxu0 %v497
      %1570 = vmatprep.subr.mxu0 0.0
      %1571 = vmatpush1.msra.mxu0 %v498
      %1572 = vmatprep.subr.mxu0 0.0
      %1573 = vmatpush1.msra.mxu0 %v499
      %1574 = vmatprep.subr.mxu0 0.0
      %1575 = vmatpush1.msra.mxu0 %v500
      %1576 = vmatprep.subr.mxu0 0.0
      %1577 = vmatpush1.msra.mxu0 %v501
      %1578 = vmatprep.subr.mxu0 0.0
      %1579 = vmatpush1.msra.mxu0 %v502
      %1580 = vmatprep.subr.mxu0 0.0
      %1581 = vmatpush1.msra.mxu0 %v503
      %1582 = vmatprep.subr.mxu0 0.0
      %1583 = vmatpush1.msra.mxu0 %v504
      %1584 = vmatprep.subr.mxu0 0.0
      %1585 = vmatpush1.msra.mxu0 %v505
      %1586 = vmatprep.subr.mxu0 0.0
      %1587 = vmatpush1.msra.mxu0 %v506
      %1588 = vmatprep.subr.mxu0 0.0
      %1589 = vmatpush1.msra.mxu0 %v507
      %1590 = vmatprep.subr.mxu0 0.0
      %1591 = vmatpush1.msra.mxu0 %v508
      %1592 = vmatprep.subr.mxu0 0.0
      %1593 = vmatpush1.msra.mxu0 %v509
      %1594 = vmatprep.subr.mxu0 0.0
      %1595 = vmatpush1.msra.mxu0 %v510
      %1596 = vmatprep.subr.mxu0 0.0
      %1597 = vmatpush1.msra.mxu0 %v511
      %1598 = vmatprep.subr.mxu0 0.0
      %1599 = vmatpush1.msra.mxu0 %v512
      %1600 = vmatprep.subr.mxu0 0.0
      %1601 = vmatpush1.msra.mxu0 %v513
      %1602 = vmatprep.subr.mxu0 0.0
      %1603 = vmatpush1.msra.mxu0 %v514
      %1604 = vmatprep.subr.mxu0 0.0
      %1605 = vmatpush1.msra.mxu0 %v515
      %1606 = vmatprep.subr.mxu0 0.0
      %1607 = vmatpush1.msra.mxu0 %v516
      %1608 = vmatprep.subr.mxu0 0.0
      %1609 = vmatpush1.msra.mxu0 %v517
      %1610 = vmatprep.subr.mxu0 0.0
      %1611 = vmatpush1.msra.mxu0 %v518
      %1612 = vmatprep.subr.mxu0 0.0
      %1613 = vmatpush1.msra.mxu0 %v519
      %1614 = vmatprep.subr.mxu0 0.0
      %1615 = vmatpush1.msra.mxu0 %v520
      %1616 = vmatprep.subr.mxu0 0.0
      %1617 = vmatpush1.msra.mxu0 %v521
      %1618 = vmatprep.subr.mxu0 0.0
      %1619 = vmatpush1.msra.mxu0 %v522
      %1620 = vmatprep.subr.mxu0 0.0
      %1621 = vmatpush1.msra.mxu0 %v523
      %1622 = vmatprep.subr.mxu0 0.0
      %1623 = vmatpush1.msra.mxu0 %v524
      %1624 = vmatprep.subr.mxu0 0.0
      %1625 = vmatpush1.msra.mxu0 %v525
      %1626 = vmatprep.mubr.f32.mxu0 %v794
      %1627 = vmatmul.mubr.f32.gmra.mrb[0].mxu0 %v786
      %v1628 = vpop.f32.mrb[0].mxu0
      %v1629 = vadd.f32 %v1559, %v1628
      %v1630 = vpop.f32.mrb[0].mxu0
      %1631 = vdwg.mxu0
      %1632 = vmatprep.subr.mxu0 0.0
      %1633 = vmatpush1.msra.mxu0 %v526
      %1634 = vmatprep.subr.mxu0 0.0
      %1635 = vmatpush1.msra.mxu0 %v527
      %1636 = vmatprep.subr.mxu0 0.0
      %1637 = vmatpush1.msra.mxu0 %v528
      %1638 = vmatprep.subr.mxu0 0.0
      %1639 = vmatpush1.msra.mxu0 %v529
      %1640 = vmatprep.subr.mxu0 0.0
      %1641 = vmatpush1.msra.mxu0 %v530
      %1642 = vmatprep.subr.mxu0 0.0
      %1643 = vmatpush1.msra.mxu0 %v531
      %1644 = vmatprep.subr.mxu0 0.0
      %1645 = vmatpush1.msra.mxu0 %v532
      %1646 = vmatprep.subr.mxu0 0.0
      %1647 = vmatpush1.msra.mxu0 %v533
      %1648 = vmatprep.subr.mxu0 0.0
      %1649 = vmatpush1.msra.mxu0 %v534
      %1650 = vmatprep.subr.mxu0 0.0
      %1651 = vmatpush1.msra.mxu0 %v535
      %1652 = vmatprep.subr.mxu0 0.0
      %1653 = vmatpush1.msra.mxu0 %v536
      %1654 = vmatprep.subr.mxu0 0.0
      %1655 = vmatpush1.msra.mxu0 %v537
      %1656 = vmatprep.subr.mxu0 0.0
      %1657 = vmatpush1.msra.mxu0 %v538
      %1658 = vmatprep.subr.mxu0 0.0
      %1659 = vmatpush1.msra.mxu0 %v539
      %1660 = vmatprep.subr.mxu0 0.0
      %1661 = vmatpush1.msra.mxu0 %v540
      %1662 = vmatprep.subr.mxu0 0.0
      %1663 = vmatpush1.msra.mxu0 %v541
      %1664 = vmatprep.subr.mxu0 0.0
      %1665 = vmatpush1.msra.mxu0 %v542
      %1666 = vmatprep.subr.mxu0 0.0
      %1667 = vmatpush1.msra.mxu0 %v543
      %1668 = vmatprep.subr.mxu0 0.0
      %1669 = vmatpush1.msra.mxu0 %v544
      %1670 = vmatprep.subr.mxu0 0.0
      %1671 = vmatpush1.msra.mxu0 %v545
      %1672 = vmatprep.subr.mxu0 0.0
      %1673 = vmatpush1.msra.mxu0 %v546
      %1674 = vmatprep.subr.mxu0 0.0
      %1675 = vmatpush1.msra.mxu0 %v547
      %1676 = vmatprep.subr.mxu0 0.0
      %1677 = vmatpush1.msra.mxu0 %v548
      %1678 = vmatprep.subr.mxu0 0.0
      %1679 = vmatpush1.msra.mxu0 %v549
      %1680 = vmatprep.subr.mxu0 0.0
      %1681 = vmatpush1.msra.mxu0 %v550
      %1682 = vmatprep.subr.mxu0 0.0
      %1683 = vmatpush1.msra.mxu0 %v551
      %1684 = vmatprep.subr.mxu0 0.0
      %1685 = vmatpush1.msra.mxu0 %v552
      %1686 = vmatprep.subr.mxu0 0.0
      %1687 = vmatpush1.msra.mxu0 %v553
      %1688 = vmatprep.subr.mxu0 0.0
      %1689 = vmatpush1.msra.mxu0 %v554
      %1690 = vmatprep.subr.mxu0 0.0
      %1691 = vmatpush1.msra.mxu0 %v555
      %1692 = vmatprep.subr.mxu0 0.0
      %1693 = vmatpush1.msra.mxu0 %v556
      %1694 = vmatprep.subr.mxu0 0.0
      %1695 = vmatpush1.msra.mxu0 %v557
      %1696 = vmatprep.mubr.f32.mxu0 %v795
      %1697 = vmatmul.mubr.f32.gmra.mrb[0].mxu0 %v793
      %v1698 = vpop.f32.mrb[0].mxu0
      %v1699 = vadd.f32 %v1629, %v1698
      %v1700 = vpop.f32.mrb[0].mxu0
      %1701 = vdwg.mxu0
      %1702 = vmatprep.subr.mxu0 0.0
      %1703 = vmatpush1.msra.mxu0 %v558
      %1704 = vmatprep.subr.mxu0 0.0
      %1705 = vmatpush1.msra.mxu0 %v559
      %1706 = vmatprep.subr.mxu0 0.0
      %1707 = vmatpush1.msra.mxu0 %v560
      %1708 = vmatprep.subr.mxu0 0.0
      %1709 = vmatpush1.msra.mxu0 %v561
      %1710 = vmatprep.subr.mxu0 0.0
      %1711 = vmatpush1.msra.mxu0 %v562
      %1712 = vmatprep.subr.mxu0 0.0
      %1713 = vmatpush1.msra.mxu0 %v563
      %1714 = vmatprep.subr.mxu0 0.0
      %1715 = vmatpush1.msra.mxu0 %v564
      %1716 = vmatprep.subr.mxu0 0.0
      %1717 = vmatpush1.msra.mxu0 %v565
      %1718 = vmatprep.subr.mxu0 0.0
      %1719 = vmatpush1.msra.mxu0 %v566
      %1720 = vmatprep.subr.mxu0 0.0
      %1721 = vmatpush1.msra.mxu0 %v567
      %1722 = vmatprep.subr.mxu0 0.0
      %1723 = vmatpush1.msra.mxu0 %v568
      %1724 = vmatprep.subr.mxu0 0.0
      %1725 = vmatpush1.msra.mxu0 %v569
      %1726 = vmatprep.subr.mxu0 0.0
      %1727 = vmatpush1.msra.mxu0 %v570
      %1728 = vmatprep.subr.mxu0 0.0
      %1729 = vmatpush1.msra.mxu0 %v571
      %1730 = vmatprep.subr.mxu0 0.0
      %1731 = vmatpush1.msra.mxu0 %v572
      %1732 = vmatprep.subr.mxu0 0.0
      %1733 = vmatpush1.msra.mxu0 %v573
      %1734 = vmatprep.subr.mxu0 0.0
      %1735 = vmatpush1.msra.mxu0 %v574
      %1736 = vmatprep.subr.mxu0 0.0
      %1737 = vmatpush1.msra.mxu0 %v575
      %1738 = vmatprep.subr.mxu0 0.0
      %1739 = vmatpush1.msra.mxu0 %v576
      %1740 = vmatprep.subr.mxu0 0.0
      %1741 = vmatpush1.msra.mxu0 %v577
      %1742 = vmatprep.subr.mxu0 0.0
      %1743 = vmatpush1.msra.mxu0 %v578
      %1744 = vmatprep.subr.mxu0 0.0
      %1745 = vmatpush1.msra.mxu0 %v579
      %1746 = vmatprep.subr.mxu0 0.0
      %1747 = vmatpush1.msra.mxu0 %v580
      %1748 = vmatprep.subr.mxu0 0.0
      %1749 = vmatpush1.msra.mxu0 %v581
      %1750 = vmatprep.subr.mxu0 0.0
      %1751 = vmatpush1.msra.mxu0 %v582
      %1752 = vmatprep.subr.mxu0 0.0
      %1753 = vmatpush1.msra.mxu0 %v583
      %1754 = vmatprep.subr.mxu0 0.0
      %1755 = vmatpush1.msra.mxu0 %v584
      %1756 = vmatprep.subr.mxu0 0.0
      %1757 = vmatpush1.msra.mxu0 %v585
      %1758 = vmatprep.subr.mxu0 0.0
      %1759 = vmatpush1.msra.mxu0 %v586
      %1760 = vmatprep.subr.mxu0 0.0
      %1761 = vmatpush1.msra.mxu0 %v587
      %1762 = vmatprep.subr.mxu0 0.0
      %1763 = vmatpush1.msra.mxu0 %v588
      %1764 = vmatprep.subr.mxu0 0.0
      %1765 = vmatpush1.msra.mxu0 %v589
      %1766 = vmatprep.mubr.f32.mxu0 %v811
      %1767 = vmatmul.mubr.f32.gmra.mrb[0].mxu0 %v803
      %v1768 = vpop.f32.mrb[0].mxu0
      %v1769 = vadd.f32 %v1699, %v1768
      %v1770 = vpop.f32.mrb[0].mxu0
      %1771 = vdwg.mxu0
      %1772 = vmatprep.subr.mxu0 0.0
      %1773 = vmatpush1.msra.mxu0 %v590
      %1774 = vmatprep.subr.mxu0 0.0
      %1775 = vmatpush1.msra.mxu0 %v591
      %1776 = vmatprep.subr.mxu0 0.0
      %1777 = vmatpush1.msra.mxu0 %v592
      %1778 = vmatprep.subr.mxu0 0.0
      %1779 = vmatpush1.msra.mxu0 %v593
      %1780 = vmatprep.subr.mxu0 0.0
      %1781 = vmatpush1.msra.mxu0 %v594
      %1782 = vmatprep.subr.mxu0 0.0
      %1783 = vmatpush1.msra.mxu0 %v595
      %1784 = vmatprep.subr.mxu0 0.0
      %1785 = vmatpush1.msra.mxu0 %v596
      %1786 = vmatprep.subr.mxu0 0.0
      %1787 = vmatpush1.msra.mxu0 %v597
      %1788 = vmatprep.subr.mxu0 0.0
      %1789 = vmatpush1.msra.mxu0 %v598
      %1790 = vmatprep.subr.mxu0 0.0
      %1791 = vmatpush1.msra.mxu0 %v599
      %1792 = vmatprep.subr.mxu0 0.0
      %1793 = vmatpush1.msra.mxu0 %v600
      %1794 = vmatprep.subr.mxu0 0.0
      %1795 = vmatpush1.msra.mxu0 %v601
      %1796 = vmatprep.subr.mxu0 0.0
      %1797 = vmatpush1.msra.mxu0 %v602
      %1798 = vmatprep.subr.mxu0 0.0
      %1799 = vmatpush1.msra.mxu0 %v603
      %1800 = vmatprep.subr.mxu0 0.0
      %1801 = vmatpush1.msra.mxu0 %v604
      %1802 = vmatprep.subr.mxu0 0.0
      %1803 = vmatpush1.msra.mxu0 %v605
      %1804 = vmatprep.subr.mxu0 0.0
      %1805 = vmatpush1.msra.mxu0 %v606
      %1806 = vmatprep.subr.mxu0 0.0
      %1807 = vmatpush1.msra.mxu0 %v607
      %1808 = vmatprep.subr.mxu0 0.0
      %1809 = vmatpush1.msra.mxu0 %v608
      %1810 = vmatprep.subr.mxu0 0.0
      %1811 = vmatpush1.msra.mxu0 %v609
      %1812 = vmatprep.subr.mxu0 0.0
      %1813 = vmatpush1.msra.mxu0 %v610
      %1814 = vmatprep.subr.mxu0 0.0
      %1815 = vmatpush1.msra.mxu0 %v611
      %1816 = vmatprep.subr.mxu0 0.0
      %1817 = vmatpush1.msra.mxu0 %v612
      %1818 = vmatprep.subr.mxu0 0.0
      %1819 = vmatpush1.msra.mxu0 %v613
      %1820 = vmatprep.subr.mxu0 0.0
      %1821 = vmatpush1.msra.mxu0 %v614
      %1822 = vmatprep.subr.mxu0 0.0
      %1823 = vmatpush1.msra.mxu0 %v615
      %1824 = vmatprep.subr.mxu0 0.0
      %1825 = vmatpush1.msra.mxu0 %v616
      %1826 = vmatprep.subr.mxu0 0.0
      %1827 = vmatpush1.msra.mxu0 %v617
      %1828 = vmatprep.subr.mxu0 0.0
      %1829 = vmatpush1.msra.mxu0 %v618
      %1830 = vmatprep.subr.mxu0 0.0
      %1831 = vmatpush1.msra.mxu0 %v619
      %1832 = vmatprep.subr.mxu0 0.0
      %1833 = vmatpush1.msra.mxu0 %v620
      %1834 = vmatprep.subr.mxu0 0.0
      %1835 = vmatpush1.msra.mxu0 %v621
      %1836 = vmatprep.mubr.f32.mxu0 %v812
      %1837 = vmatmul.mubr.f32.gmra.mrb[0].mxu0 %v810
      %v1838 = vpop.f32.mrb[0].mxu0
      %v1839 = vadd.f32 %v1769, %v1838
      %v1840 = vpop.f32.mrb[0].mxu0
      %1841 = vdwg.mxu0
      %1842 = vmatprep.subr.mxu0 0.0
      %1843 = vmatpush1.msra.mxu0 %v622
      %1844 = vmatprep.subr.mxu0 0.0
      %1845 = vmatpush1.msra.mxu0 %v623
      %1846 = vmatprep.subr.mxu0 0.0
      %1847 = vmatpush1.msra.mxu0 %v624
      %1848 = vmatprep.subr.mxu0 0.0
      %1849 = vmatpush1.msra.mxu0 %v625
      %1850 = vmatprep.subr.mxu0 0.0
      %1851 = vmatpush1.msra.mxu0 %v626
      %1852 = vmatprep.subr.mxu0 0.0
      %1853 = vmatpush1.msra.mxu0 %v627
      %1854 = vmatprep.subr.mxu0 0.0
      %1855 = vmatpush1.msra.mxu0 %v628
      %1856 = vmatprep.subr.mxu0 0.0
      %1857 = vmatpush1.msra.mxu0 %v629
      %1858 = vmatprep.subr.mxu0 0.0
      %1859 = vmatpush1.msra.mxu0 %v630
      %1860 = vmatprep.subr.mxu0 0.0
      %1861 = vmatpush1.msra.mxu0 %v631
      %1862 = vmatprep.subr.mxu0 0.0
      %1863 = vmatpush1.msra.mxu0 %v632
      %1864 = vmatprep.subr.mxu0 0.0
      %1865 = vmatpush1.msra.mxu0 %v633
      %1866 = vmatprep.subr.mxu0 0.0
      %1867 = vmatpush1.msra.mxu0 %v634
      %1868 = vmatprep.subr.mxu0 0.0
      %1869 = vmatpush1.msra.mxu0 %v635
      %1870 = vmatprep.subr.mxu0 0.0
      %1871 = vmatpush1.msra.mxu0 %v636
      %1872 = vmatprep.subr.mxu0 0.0
      %1873 = vmatpush1.msra.mxu0 %v637
      %1874 = vmatprep.subr.mxu0 0.0
      %1875 = vmatpush1.msra.mxu0 %v638
      %1876 = vmatprep.subr.mxu0 0.0
      %1877 = vmatpush1.msra.mxu0 %v639
      %1878 = vmatprep.subr.mxu0 0.0
      %1879 = vmatpush1.msra.mxu0 %v640
      %1880 = vmatprep.subr.mxu0 0.0
      %1881 = vmatpush1.msra.mxu0 %v641
      %1882 = vmatprep.subr.mxu0 0.0
      %1883 = vmatpush1.msra.mxu0 %v642
      %1884 = vmatprep.subr.mxu0 0.0
      %1885 = vmatpush1.msra.mxu0 %v643
      %1886 = vmatprep.subr.mxu0 0.0
      %1887 = vmatpush1.msra.mxu0 %v644
      %1888 = vmatprep.subr.mxu0 0.0
      %1889 = vmatpush1.msra.mxu0 %v645
      %1890 = vmatprep.subr.mxu0 0.0
      %1891 = vmatpush1.msra.mxu0 %v646
      %1892 = vmatprep.subr.mxu0 0.0
      %1893 = vmatpush1.msra.mxu0 %v647
      %1894 = vmatprep.subr.mxu0 0.0
      %1895 = vmatpush1.msra.mxu0 %v648
      %1896 = vmatprep.subr.mxu0 0.0
      %1897 = vmatpush1.msra.mxu0 %v649
      %1898 = vmatprep.subr.mxu0 0.0
      %1899 = vmatpush1.msra.mxu0 %v650
      %1900 = vmatprep.subr.mxu0 0.0
      %1901 = vmatpush1.msra.mxu0 %v651
      %1902 = vmatprep.subr.mxu0 0.0
      %1903 = vmatpush1.msra.mxu0 %v652
      %1904 = vmatprep.subr.mxu0 0.0
      %1905 = vmatpush1.msra.mxu0 %v653
      %1906 = vmatprep.mubr.f32.mxu0 %v828
      %1907 = vmatmul.mubr.f32.gmra.mrb[0].mxu0 %v820
      %v1908 = vpop.f32.mrb[0].mxu0
      %v1909 = vadd.f32 %v1839, %v1908
      %v1910 = vpop.f32.mrb[0].mxu0
      %1911 = vdwg.mxu0
      %1912 = vmatprep.subr.mxu0 0.0
      %1913 = vmatpush1.msra.mxu0 %v654
      %1914 = vmatprep.subr.mxu0 0.0
      %1915 = vmatpush1.msra.mxu0 %v655
      %1916 = vmatprep.subr.mxu0 0.0
      %1917 = vmatpush1.msra.mxu0 %v656
      %1918 = vmatprep.subr.mxu0 0.0
      %1919 = vmatpush1.msra.mxu0 %v657
      %1920 = vmatprep.subr.mxu0 0.0
      %1921 = vmatpush1.msra.mxu0 %v658
      %1922 = vmatprep.subr.mxu0 0.0
      %1923 = vmatpush1.msra.mxu0 %v659
      %1924 = vmatprep.subr.mxu0 0.0
      %1925 = vmatpush1.msra.mxu0 %v660
      %1926 = vmatprep.subr.mxu0 0.0
      %1927 = vmatpush1.msra.mxu0 %v661
      %1928 = vmatprep.subr.mxu0 0.0
      %1929 = vmatpush1.msra.mxu0 %v662
      %1930 = vmatprep.subr.mxu0 0.0
      %1931 = vmatpush1.msra.mxu0 %v663
      %1932 = vmatprep.subr.mxu0 0.0
      %1933 = vmatpush1.msra.mxu0 %v664
      %1934 = vmatprep.subr.mxu0 0.0
      %1935 = vmatpush1.msra.mxu0 %v665
      %1936 = vmatprep.subr.mxu0 0.0
      %1937 = vmatpush1.msra.mxu0 %v666
      %1938 = vmatprep.subr.mxu0 0.0
      %1939 = vmatpush1.msra.mxu0 %v667
      %1940 = vmatprep.subr.mxu0 0.0
      %1941 = vmatpush1.msra.mxu0 %v668
      %1942 = vmatprep.subr.mxu0 0.0
      %1943 = vmatpush1.msra.mxu0 %v669
      %1944 = vmatprep.subr.mxu0 0.0
      %1945 = vmatpush1.msra.mxu0 %v670
      %1946 = vmatprep.subr.mxu0 0.0
      %1947 = vmatpush1.msra.mxu0 %v671
      %1948 = vmatprep.subr.mxu0 0.0
      %1949 = vmatpush1.msra.mxu0 %v672
      %1950 = vmatprep.subr.mxu0 0.0
      %1951 = vmatpush1.msra.mxu0 %v673
      %1952 = vmatprep.subr.mxu0 0.0
      %1953 = vmatpush1.msra.mxu0 %v674
      %1954 = vmatprep.subr.mxu0 0.0
      %1955 = vmatpush1.msra.mxu0 %v675
      %1956 = vmatprep.subr.mxu0 0.0
      %1957 = vmatpush1.msra.mxu0 %v676
      %1958 = vmatprep.subr.mxu0 0.0
      %1959 = vmatpush1.msra.mxu0 %v677
      %1960 = vmatprep.subr.mxu0 0.0
      %1961 = vmatpush1.msra.mxu0 %v678
      %1962 = vmatprep.subr.mxu0 0.0
      %1963 = vmatpush1.msra.mxu0 %v679
      %1964 = vmatprep.subr.mxu0 0.0
      %1965 = vmatpush1.msra.mxu0 %v680
      %1966 = vmatprep.subr.mxu0 0.0
      %1967 = vmatpush1.msra.mxu0 %v681
      %1968 = vmatprep.subr.mxu0 0.0
      %1969 = vmatpush1.msra.mxu0 %v682
      %1970 = vmatprep.subr.mxu0 0.0
      %1971 = vmatpush1.msra.mxu0 %v683
      %1972 = vmatprep.subr.mxu0 0.0
      %1973 = vmatpush1.msra.mxu0 %v684
      %1974 = vmatprep.subr.mxu0 0.0
      %1975 = vmatpush1.msra.mxu0 %v685
      %1976 = vmatprep.mubr.f32.mxu0 %v829
      %1977 = vmatmul.mubr.f32.gmra.mrb[0].mxu0 %v827
      %v1978 = vpop.f32.mrb[0].mxu0
      %v1979 = vadd.f32 %v1909, %v1978
      %v1980 = vpop.f32.mrb[0].mxu0
      %1981 = vdwg.mxu0
      %vm1982 = vcmask 812032
      %1983 = vst.msk [vmem:[%s165] sm:$0x3] %vm1982, %v1979
      %p1984 = scmp.lt.s32.totalorder %s13, 1
      %s1985 = scalar_select %p1984, %s13, 1
      %s1986 = smul.addr %s1985, 2
      %s1987 = scalar_lea.vmem %s2, %s1986
      // Predicated region
      $region29: #{simple_cnn_forward.3} parent=27 // pred_check
        %p1988 = pneg %p83
      $region30: #{simple_cnn_forward.3} parent=27 // pred_check_branch
        %1990 = sbr.rel (%p1988) target = $region32
      $region31: #{simple_cnn_forward.3} parent=27 // pred_region
        _
      $region32: #{simple_cnn_forward.3} parent=27 // pred_fallthru
        _
    $region28: #{simple_cnn_forward.3} parent=5 // pred_fallthru
      _
    %p1991 = scmp.le.s32.totalorder 2, %s8
    // Predicated region
    $region33: #{simple_cnn_forward.3} parent=5 // pred_check
      %p1992 = pneg %p1991
    $region34: #{simple_cnn_forward.3} parent=5 // pred_check_branch
      %1994 = sbr.rel (%p1992) target = $region36
    $region35: #{simple_cnn_forward.3} parent=5 // pred_region
      %s1995 = ssub.s32 %s8, 2
      // Predicated region
      $region37: #{simple_cnn_forward.3} parent=35 // pred_check
        %p1996 = pneg %p89
      $region38: #{simple_cnn_forward.3} parent=35 // pred_check_branch
        %1998 = sbr.rel (%p1996) target = $region40
      $region39: #{simple_cnn_forward.3} parent=35 // pred_region
        %p1999 = scmp.lt.s32.totalorder %s14, 1
        %s2000 = scalar_select %p1999, %s14, 1
        %s2001 = smul.addr %s2000, 2
        %s2002 = scalar_lea.vmem %s2, %s2001
      $region40: #{simple_cnn_forward.3} parent=35 // pred_fallthru
        _
    $region36: #{simple_cnn_forward.3} parent=5 // pred_fallthru
      _
  $region6: #{simple_cnn_forward.3} parent=0 // loop_footer
    %s12 = sadd.s32 1, %s8
  $region7: #{simple_cnn_forward.3} parent=0 // loop_footer_branch
    %7 = sbr.rel target = $region3
  $region8: #{simple_cnn_forward.3} parent=0 // loop_exit
    _

</llo_original>
